<compile_context>
chip_gen: v7x
topology: tpu7x:2x2x1
jax: 0.10.0
libtpu: 0.0.40
codegen_flags: <defaults>
</compile_context>

<pallas_src>
import functools

import numpy as np
import jax
import jax.numpy as jnp
from jax.experimental import pallas as pl
from jax.experimental.pallas import tpu as pltpu


# ----------------------------- constant builders -----------------------------

def _hz_to_mel(f):
    return 2595.0 * np.log10(1.0 + f / 700.0)


def _mel_to_hz(m):
    return 700.0 * (10.0 ** (m / 2595.0) - 1.0)


def mel_filterbank(n_freqs, f_min, f_max, n_mels, sample_rate):
    """torchaudio.functional.melscale_fbanks(norm=None, mel_scale='htk')."""
    all_freqs = np.linspace(0, sample_rate // 2, n_freqs)
    m_pts = np.linspace(_hz_to_mel(f_min), _hz_to_mel(f_max), n_mels + 2)
    f_pts = _mel_to_hz(m_pts)
    f_diff = f_pts[1:] - f_pts[:-1]                       # (n_mels+1,)
    slopes = f_pts[None, :] - all_freqs[:, None]          # (n_freqs, n_mels+2)
    down = -slopes[:, :-2] / f_diff[:-1]
    up = slopes[:, 2:] / f_diff[1:]
    fb = np.maximum(0.0, np.minimum(down, up))
    return fb.astype(np.float32)                          # (n_freqs, n_mels)


# --------------------------------- kernel ------------------------------------

def _logmel_kernel(frames_ref, dft_ref, fb2_ref, out_ref, *,
                   normalize, mean, inv_std):
    # frames_ref: (1, T_TILE, n_fft)  compute dtype (raw framed audio)
    # dft_ref:    (n_fft, n_fft)      window-folded [cos_k | -sin_k] columns
    # fb2_ref:    (n_fft, Mpad)       mel fb rows duplicated for cos/sin columns
    # out_ref:    (1, Mpad, T_TILE)   output dtype
    s = jnp.dot(frames_ref[0], dft_ref[...],
                preferred_element_type=jnp.float32)                 # (T, n_fft)
    power = s * s                                                   # re^2 / im^2 per column
    mel = jnp.dot(power.astype(fb2_ref.dtype), fb2_ref[...],
                  preferred_element_type=jnp.float32)               # (T, Mpad)
    logmel = jnp.log(mel + 1e-9)
    if normalize:
        logmel = (logmel - mean) * inv_std
    out_ref[0] = logmel.T.astype(out_ref.dtype)                     # (Mpad, T)


# --------------------------------- module ------------------------------------

class AudioPreprocessing:
    """JAX/Pallas port of ASR/nnet/preprocessing.py::AudioPreprocessing.

    Input : (batch, audio_len) waveform
    Output: (batch, n_mels, audio_len // hop_length + 1) log-mel spectrogram
    """

    def __init__(self, sample_rate=16000, n_fft=512, win_length_ms=25,
                 hop_length_ms=10, n_mels=80, normalize=False, mean=0.0, std=1.0,
                 compute_dtype=jnp.bfloat16):
        assert n_fft % 2 == 0, "n_fft must be even"
        self.sample_rate = sample_rate
        self.n_fft = n_fft
        self.win_length = int(sample_rate * win_length_ms) // 1000
        self.hop_length = int(sample_rate * hop_length_ms) // 1000
        self.n_mels = n_mels
        self.normalize = normalize
        self.mean = float(mean)
        self.std = float(std)
        self.compute_dtype = np.dtype(compute_dtype)

        n_freq = n_fft // 2 + 1
        self.n_freq = n_freq
        self.n_mels_pad = ((n_mels + 127) // 128) * 128       # lane-dense mel dim

        # Hann window (periodic, torch.hann_window default), center-padded to n_fft.
        n = np.arange(self.win_length)
        hann = 0.5 - 0.5 * np.cos(2.0 * np.pi * n / self.win_length)
        lp = (n_fft - self.win_length) // 2
        window = np.pad(hann, (lp, n_fft - self.win_length - lp))   # (n_fft,)

        # Onesided real DFT as ONE matmul of width exactly n_fft:
        #   cos columns  k = 0 .. n_fft/2        (n_freq columns)
        #   -sin columns k = 1 .. n_fft/2 - 1    (sin == 0 at k=0 and Nyquist)
        # Window folded in so the kernel never multiplies frames by the window.
        n_idx = np.arange(n_fft)
        k_cos = np.arange(n_freq)
        k_sin = np.arange(1, n_freq - 1)
        cos_cols = np.cos(2.0 * np.pi * np.outer(n_idx, k_cos) / n_fft)
        sin_cols = -np.sin(2.0 * np.pi * np.outer(n_idx, k_sin) / n_fft)
        dft = np.concatenate([cos_cols, sin_cols], axis=1) * window[:, None]
        assert dft.shape == (n_fft, n_fft)
        self.dft = jnp.asarray(dft.astype(np.float32), dtype=self.compute_dtype)

        # Mel filterbank rows duplicated to match the cos/sin column layout so
        #   (s*s) @ fb2 == sum_k (re_k^2 + im_k^2) * fb[k]   exactly.
        fb = mel_filterbank(n_freq, 0.0, 8000.0, n_mels, sample_rate)  # (n_freq, n_mels)
        fb2 = np.concatenate([fb[k_cos], fb[k_sin]], axis=0)           # (n_fft, n_mels)
        fb2 = np.pad(fb2, ((0, 0), (0, self.n_mels_pad - n_mels)))
        self.fb2 = jnp.asarray(fb2, dtype=self.compute_dtype)          # (n_fft, Mpad)

    # ---- glue: center reflect-pad + frame the waveform -----------------------
    def _frame(self, x32):
        """Returns (frames(B, t_pad, n_fft) in compute_dtype, n_frames, t_tile, t_pad).

        Frames with index >= n_frames are padding; their log-mel values are
        sliced off in __call__.  Framing is done with ceil(n_fft/hop) contiguous
        slices of the hop-chunked waveform + one concat (no XLA gather): frame t
        starts at t*hop, so it is exactly chunks [t, t + n_parts) truncated to
        n_fft samples.
        """
        B, L = x32.shape
        hop, n_fft = self.hop_length, self.n_fft
        pad = n_fft // 2
        xp = jnp.pad(x32, ((0, 0), (pad, pad)), mode="reflect")
        n_frames = L // hop + 1

        # Frame-axis tile: large enough to amortize the ~0.35 us per-grid-step
        # overhead against the per-tile MXU work, small enough to bound VMEM.
        t_tile = min(1024, 128 * int(pl.cdiv(n_frames, 128)))
        t_pad = t_tile * int(pl.cdiv(n_frames, t_tile))

        n_parts = -(-n_fft // hop)               # ceil(n_fft / hop)
        n_chunks = t_pad + n_parts - 1
        need = n_chunks * hop
        if need > xp.shape[1]:
            xp = jnp.pad(xp, ((0, 0), (0, need - xp.shape[1])))
        else:
            xp = xp[:, :need]
        xp = xp.astype(self.compute_dtype)

        # TODO(synk): move framing fully into the kernel (stream the 1-D padded
        # waveform with memory_space=pl.ANY and assemble frames in VMEM) to avoid
        # the ~3.2x-expanded frames tensor in HBM; hop=160 is not lane-aligned so
        # that relayout needs dedicated work.  The kernel is MXU-bound, so the
        # extra HBM traffic is not the bottleneck today.
        xc = xp.reshape(B, n_chunks, hop)
        parts = [xc[:, i:i + t_pad] for i in range(n_parts)]   # (B, t_pad, hop) each
        frames = jnp.concatenate(parts, axis=-1)[:, :, :n_fft]  # (B, t_pad, n_fft)
        return frames, n_frames, t_tile, t_pad

    def __call__(self, x, lengths=None):
        dtype = x.dtype
        frames, n_frames, t_tile, t_pad = self._frame(x.astype(jnp.float32))
        B = frames.shape[0]
        n_fft, m_pad = self.n_fft, self.n_mels_pad

        c_bytes = self.compute_dtype.itemsize
        o_bytes = np.dtype(dtype).itemsize
        flops = (2 * B * t_pad * n_fft * n_fft            # DFT matmul
                 + 2 * B * t_pad * n_fft * m_pad          # mel matmul
                 + B * t_pad * (n_fft + 2 * m_pad))       # square + eps/normalize
        bytes_accessed = (frames.size * c_bytes
                          + self.dft.size * c_bytes
                          + self.fb2.size * c_bytes
                          + B * m_pad * t_pad * o_bytes)

        kernel = functools.partial(_logmel_kernel,
                                   normalize=self.normalize,
                                   mean=self.mean,
                                   inv_std=1.0 / self.std)

        out = pl.pallas_call(
            kernel,
            out_shape=jax.ShapeDtypeStruct((B, m_pad, t_pad), dtype),
            grid=(B, t_pad // t_tile),
            in_specs=[
                pl.BlockSpec((1, t_tile, n_fft), lambda b, t: (b, t, 0)),
                pl.BlockSpec((n_fft, n_fft), lambda b, t: (0, 0)),
                pl.BlockSpec((n_fft, m_pad), lambda b, t: (0, 0)),
            ],
            out_specs=pl.BlockSpec((1, m_pad, t_tile), lambda b, t: (b, 0, t)),
            compiler_params=pltpu.CompilerParams(
                dimension_semantics=("parallel", "parallel"),
                vmem_limit_bytes=32 * 1024 * 1024),
            cost_estimate=pl.CostEstimate(
                flops=int(flops),
                transcendentals=int(B * t_pad * m_pad),
                bytes_accessed=int(bytes_accessed)),
        )(frames, self.dft, self.fb2)

        x_out = out[:, :self.n_mels, :n_frames]            # (B, n_mels, n_frames)
        if lengths is not None:
            lengths = lengths // self.hop_length + 1
            return x_out, lengths
        return x_out

    # ---- pure-JAX reference for correctness checking -------------------------
    def reference(self, x):
        """Mirrors the kernel's operand precision (frames / DFT / fb / power in
        compute_dtype, f32 accumulation).  With compute_dtype=float32 this is a
        full-precision reference."""
        dtype = x.dtype
        frames, n_frames, _, _ = self._frame(x.astype(jnp.float32))
        frames = frames[:, :n_frames]
        hp = jax.lax.Precision.HIGHEST
        s = jnp.einsum("btn,nk->btk", frames, self.dft,
                       preferred_element_type=jnp.float32, precision=hp)
        power = s * s
        mel = jnp.einsum("btk,km->btm", power.astype(self.compute_dtype), self.fb2,
                         preferred_element_type=jnp.float32, precision=hp)
        logmel = jnp.log(mel[..., :self.n_mels] + 1e-9)
        if self.normalize:
            logmel = (logmel - self.mean) / self.std
        return jnp.transpose(logmel, (0, 2, 1)).astype(dtype)


# ----------------------------------- main -------------------------------------

if __name__ == "__main__":
    key = jax.random.PRNGKey(0)
    batch, audio_len = 2, 1600                      # 0.1 s @ 16 kHz -> 11 frames
    x = jax.random.normal(key, (batch, audio_len), dtype=jnp.float32)
    expected_frames = audio_len // 160 + 1

    # Fast path: bf16 operands, f32 MXU accumulation (default).
    model = AudioPreprocessing()
    out = jax.block_until_ready(model(x))
    assert out.shape == (batch, model.n_mels, expected_frames), out.shape
    assert out.dtype == x.dtype
    ref = jax.block_until_ready(model.reference(x))
    np.testing.assert_allclose(np.asarray(out), np.asarray(ref), rtol=2e-2, atol=2e-2)

    # f32 compute path against a HIGHEST-precision reference (math correctness).
    model_f32 = AudioPreprocessing(compute_dtype=jnp.float32)
    out_f32 = jax.block_until_ready(model_f32(x))
    ref_f32 = jax.block_until_ready(model_f32.reference(x))
    np.testing.assert_allclose(np.asarray(out_f32), np.asarray(ref_f32),
                               rtol=2e-2, atol=2e-2)

    # lengths plumbing
    lengths = jnp.array([audio_len, audio_len // 2], dtype=jnp.int32)
    out_l, lens_out = model(x, lengths)
    jax.block_until_ready(out_l)
    np.testing.assert_array_equal(np.asarray(lens_out),
                                  np.asarray(lengths) // 160 + 1)

    print("KERNEL_OK")
</pallas_src>

<mosaic_0001>
module attributes {stable_mosaic.version = 11 : i64} {
  func.func @_logmel_kernel(%arg0: i32, %arg1: i32, %arg2: memref<1x128x512xbf16, #tpu.memory_space<vmem>>, %arg3: memref<512x512xbf16, #tpu.memory_space<vmem>>, %arg4: memref<512x128xbf16, #tpu.memory_space<vmem>>, %arg5: memref<1x128x128xf32, #tpu.memory_space<vmem>>) attributes {dimension_semantics = [#tpu.dimension_semantics<parallel>, #tpu.dimension_semantics<parallel>], iteration_bounds = array<i64: 2, 1>, scalar_prefetch = 0 : i64, scratch_operands = 0 : i64, tpu.core_type = #tpu.core_type<tc>, window_params = [{transform_indices = @transform_0, window_bounds = array<i64: 1, 128, 512>}, {pipeline_mode = #tpu.pipeline_mode<synchronous>, transform_indices = @transform_1, window_bounds = array<i64: 512, 512>}, {pipeline_mode = #tpu.pipeline_mode<synchronous>, transform_indices = @transform_2, window_bounds = array<i64: 512, 128>}, {transform_indices = @transform_3, window_bounds = array<i64: 1, 128, 128>}]} {
    %c0 = arith.constant 0 : index
    %c0_0 = arith.constant 0 : index
    %c0_1 = arith.constant 0 : index
    %0 = vector.load %arg2[%c0, %c0_0, %c0_1] : memref<1x128x512xbf16, #tpu.memory_space<vmem>>, vector<1x128x512xbf16>
    %1 = vector.shape_cast %0 : vector<1x128x512xbf16> to vector<128x512xbf16>
    %c0_2 = arith.constant 0 : index
    %c0_3 = arith.constant 0 : index
    %2 = vector.load %arg3[%c0_2, %c0_3] : memref<512x512xbf16, #tpu.memory_space<vmem>>, vector<512x512xbf16>
    %cst = arith.constant dense<0.000000e+00> : vector<128x512xf32>
    %3 = tpu.matmul %1, %2, %cst {dimension_numbers = #tpu.dot_dimension_numbers<[1], [0], [0], [1], [0, 0, 1, 1], [], []>} : vector<128x512xbf16>, vector<512x512xbf16>, vector<128x512xf32> -> vector<128x512xf32>
    %4 = arith.mulf %3, %3 : vector<128x512xf32>
    %5 = arith.truncf %4 : vector<128x512xf32> to vector<128x512xbf16>
    %c0_4 = arith.constant 0 : index
    %c0_5 = arith.constant 0 : index
    %6 = vector.load %arg4[%c0_4, %c0_5] : memref<512x128xbf16, #tpu.memory_space<vmem>>, vector<512x128xbf16>
    %cst_6 = arith.constant dense<0.000000e+00> : vector<128x128xf32>
    %7 = tpu.matmul %5, %6, %cst_6 {dimension_numbers = #tpu.dot_dimension_numbers<[1], [0], [0], [1], [0, 0, 1, 1], [], []>} : vector<128x512xbf16>, vector<512x128xbf16>, vector<128x128xf32> -> vector<128x128xf32>
    %cst_7 = arith.constant 9.99999971E-10 : f32
    %8 = vector.broadcast %cst_7 : f32 to vector<128x128xf32>
    %9 = arith.addf %7, %8 : vector<128x128xf32>
    %10 = math.log %9 : vector<128x128xf32>
    %11 = tpu.transpose %10, [1, 0] : vector<128x128xf32> -> vector<128x128xf32>
    %c0_8 = arith.constant 0 : index
    %c0_9 = arith.constant 0 : index
    %c0_10 = arith.constant 0 : index
    %12 = vector.load %arg5[%c0_8, %c0_9, %c0_10] : memref<1x128x128xf32, #tpu.memory_space<vmem>>, vector<1x128x128xf32>
    %13 = vector.shape_cast %12 : vector<1x128x128xf32> to vector<128x128xf32>
    %14 = vector.shape_cast %11 : vector<128x128xf32> to vector<1x128x128xf32>
    tpu.vector_store %arg5[%c0_8, %c0_9, %c0_10], %14 {strides = array<i32>} : memref<1x128x128xf32, #tpu.memory_space<vmem>>, vector<1x128x128xf32>,
    return
  }
  func.func @transform_0(%arg0: i32, %arg1: i32) -> (i32, i32, i32) {
    %c0_i32 = arith.constant 0 : i32
    %c0_i32_0 = arith.constant 0 : i32
    return %arg0, %arg1, %c0_i32 : i32, i32, i32
  }
  func.func @transform_1(%arg0: i32, %arg1: i32) -> (i32, i32) {
    %c0_i32 = arith.constant 0 : i32
    %c0_i32_0 = arith.constant 0 : i32
    %c0_i32_1 = arith.constant 0 : i32
    return %c0_i32, %c0_i32_0 : i32, i32
  }
  func.func @transform_2(%arg0: i32, %arg1: i32) -> (i32, i32) {
    %c0_i32 = arith.constant 0 : i32
    %c0_i32_0 = arith.constant 0 : i32
    %c0_i32_1 = arith.constant 0 : i32
    return %c0_i32, %c0_i32_0 : i32, i32
  }
  func.func @transform_3(%arg0: i32, %arg1: i32) -> (i32, i32, i32) {
    %c0_i32 = arith.constant 0 : i32
    %c0_i32_0 = arith.constant 0 : i32
    return %arg0, %c0_i32, %arg1 : i32, i32, i32
  }
}

</mosaic_0001>

<llo_original>
// kernel: tpu_custom_call.1
$region0: #{tpu_custom_call.1}
  #allocation0 [shape = 'u32[]', space=smem, size = 0x4, offset = 0x4, fixed_abs, tag = 'smem constant byte address 0x4 - core index']
  #allocation1 [shape = 'u32[144,128]{1,0:T(1,128)}', space=vmem, size = 0x12000, scoped, tag = 'internal scratch']
  %s0 = inlined_call_operand.hbm [shape: bf16[2,128,512], index: 0, kind: input, shape index: {}]
  %s1 = inlined_call_operand.hbm [shape: bf16[512,512], index: 1, kind: input, shape index: {}]
  %s2 = inlined_call_operand.hbm [shape: bf16[512,128], index: 2, kind: input, shape index: {}]
  %s3 = inlined_call_operand.hbm [shape: f32[2,128,128], index: 3, kind: output, shape index: {}]
  %s4 = sld [smem:[#allocation0]]
  $region57: #{tpu_custom_call.1} parent=0
    _
  %s6 = ssub.s32 1, %s4
  %s7 = scalar_select 0, %s6, %s4
  $region1: #{tpu_custom_call.1} parent=0
    #allocation2 [shape = 'u8[262144]{0}', space=vmem, size = 0x40000, scoped, tag = 'input window, operand 0']
    #allocation3 [shape = 's32[2]{0}', space=sflag, size = 0x8, scoped, tag = 'scoped memory for tpu_custom_call.1']
    #allocation4 [shape = 's32[2]{0}', space=sflag, size = 0x8, scoped, tag = 'scoped memory for tpu_custom_call.1']
    #allocation5 [shape = 'u8[524288]{0}', space=vmem, size = 0x80000, scoped, tag = 'input window, operand 1, single buffered']
    #allocation6 [shape = 's32[1]{0}', space=sflag, size = 0x4, scoped, tag = 'scoped memory for tpu_custom_call.1']
    #allocation7 [shape = 'u8[131072]{0}', space=vmem, size = 0x20000, scoped, tag = 'input window, operand 2, single buffered']
    #allocation8 [shape = 'u8[131072]{0}', space=vmem, size = 0x20000, scoped, tag = 'output window, operand 0']
    %8 = vsyncpa [#allocation3], 0
    %s9 = scalar_lea.sflag [#allocation3], 1
    %10 = vsyncpa %s9, 0
    %11 = vsyncpa [#allocation6], 0
    %12 = vsyncpa [#allocation4], 0
    %s13 = scalar_lea.sflag [#allocation4], 1
    %14 = vsyncpa %s13, 0
    loop: start=0, step=1, limit=4
    $region2: #{tpu_custom_call.1} parent=1 // loop_pre_header
      _
    $region3: #{tpu_custom_call.1} parent=1 // loop_header
      %s16 = sphi 0, %s20
      %p17 = scmp.ge.s32.totalorder %s16, 4
      %s23 = sphi 0, %s35
      %s24 = sphi 0, %s31
      %s25 = sphi 0, %s23
      %s26 = sphi 0, %s24
      %s27 = sphi 0, %s25
      %s28 = sphi 0, %s26
      %s40 = sphi 0, %s42
      %s43 = sphi 0, %s40
      %s44 = sphi 0, %s43
      %s60 = sphi 0, %s44
      %s64 = sphi 0, %s64
      %s66 = sphi 0, %s64
      %s67 = sphi 0, %s66
      %s81 = sphi 0, %s67
      %s85 = sphi 0, %s85
      %s87 = sphi 0, %s85
      %s88 = sphi 0, %s87
      %s102 = sphi 0, %s88
      %s110 = sphi 0, %s112
      %s113 = sphi 0, %s110
      %s114 = sphi 0, %s113
      %s130 = sphi 0, %s114
    $region4: #{tpu_custom_call.1} parent=1 // loop_header_branch
      %19 = sbr.rel (%p17) target = $region8
    $region5: #{tpu_custom_call.1} parent=1 // loop_body
      %s21 = ssub.s32 %s16, 1
      %s22 = ssub.s32 %s16, 2
      %s29 = sadd.s32 1, %s24
      %p30 = scmp.ge.s32.totalorder %s29, 1
      %s31 = scalar_select %p30, 0, %s29
      %s32 = sadd.s32 1, %s23
      %s33 = scalar_select %p30, %s32, %s23
      %p34 = scmp.ge.s32.totalorder %s33, 2
      %s35 = scalar_select %p34, 0, %s33
      %s36 = ssub.s32 %s23, %s35
      %s37 = ssub.s32 %s24, %s31
      %s38 = sor.u32 %s36, %s37
      %p39 = scmp.eq.s32.totalorder %s38, 0
      %s41 = sadd.s32 %s40, 1
      %s42 = scalar_select %p39, %s40, %s41
      %p45 = pneg %p39
      %p46 = scmp.eq.s32.totalorder %s16, 1
      %p47 = por %p45, %p46
      %p48 = scmp.ne.s32.totalorder %s40, %s43
      %p49 = scmp.eq.s32.totalorder %s16, 0
      %p50 = por %p48, %p49
      %p51 = scmp.ne.s32.totalorder %s40, %s43
      %p52 = scmp.eq.s32.totalorder %s21, 1
      %p53 = por %p51, %p52
      %p54 = scmp.ne.s32.totalorder %s43, %s44
      %p55 = scmp.eq.s32.totalorder %s21, 0
      %p56 = por %p54, %p55
      %p57 = scmp.ne.s32.totalorder %s43, %s44
      %p58 = scmp.eq.s32.totalorder %s22, 1
      %p59 = por %p57, %p58
      %p61 = scmp.ne.s32.totalorder %s44, %s60
      %p62 = scmp.eq.s32.totalorder %s22, 0
      %p63 = por %p61, %p62
      %s65 = sadd.s32 %s64, 1
      %p68 = scmp.eq.s32.totalorder %s16, 1
      %p69 = scmp.ne.s32.totalorder %s64, %s66
      %p70 = scmp.eq.s32.totalorder %s16, 0
      %p71 = por %p69, %p70
      %p72 = scmp.ne.s32.totalorder %s64, %s66
      %p73 = scmp.eq.s32.totalorder %s21, 1
      %p74 = por %p72, %p73
      %p75 = scmp.ne.s32.totalorder %s66, %s67
      %p76 = scmp.eq.s32.totalorder %s21, 0
      %p77 = por %p75, %p76
      %p78 = scmp.ne.s32.totalorder %s66, %s67
      %p79 = scmp.eq.s32.totalorder %s22, 1
      %p80 = por %p78, %p79
      %p82 = scmp.ne.s32.totalorder %s67, %s81
      %p83 = scmp.eq.s32.totalorder %s22, 0
      %p84 = por %p82, %p83
      %s86 = sadd.s32 %s85, 1
      %p89 = scmp.eq.s32.totalorder %s16, 1
      %p90 = scmp.ne.s32.totalorder %s85, %s87
      %p91 = scmp.eq.s32.totalorder %s16, 0
      %p92 = por %p90, %p91
      %p93 = scmp.ne.s32.totalorder %s85, %s87
      %p94 = scmp.eq.s32.totalorder %s21, 1
      %p95 = por %p93, %p94
      %p96 = scmp.ne.s32.totalorder %s87, %s88
      %p97 = scmp.eq.s32.totalorder %s21, 0
      %p98 = por %p96, %p97
      %p99 = scmp.ne.s32.totalorder %s87, %s88
      %p100 = scmp.eq.s32.totalorder %s22, 1
      %p101 = por %p99, %p100
      %p103 = scmp.ne.s32.totalorder %s88, %s102
      %p104 = scmp.eq.s32.totalorder %s22, 0
      %p105 = por %p103, %p104
      %s106 = ssub.s32 %s23, %s35
      %s107 = ssub.s32 %s24, %s31
      %s108 = sor.u32 %s106, %s107
      %p109 = scmp.eq.s32.totalorder %s108, 0
      %s111 = sadd.s32 %s110, 1
      %s112 = scalar_select %p109, %s110, %s111
      %p115 = pneg %p109
      %p116 = scmp.eq.s32.totalorder %s16, 1
      %p117 = por %p115, %p116
      %p118 = scmp.ne.s32.totalorder %s110, %s113
      %p119 = scmp.eq.s32.totalorder %s16, 0
      %p120 = por %p118, %p119
      %p121 = scmp.ne.s32.totalorder %s110, %s113
      %p122 = scmp.eq.s32.totalorder %s21, 1
      %p123 = por %p121, %p122
      %p124 = scmp.ne.s32.totalorder %s113, %s114
      %p125 = scmp.eq.s32.totalorder %s21, 0
      %p126 = por %p124, %p125
      %p127 = scmp.ne.s32.totalorder %s113, %s114
      %p128 = scmp.eq.s32.totalorder %s22, 1
      %p129 = por %p127, %p128
      %p131 = scmp.ne.s32.totalorder %s114, %s130
      %p132 = scmp.eq.s32.totalorder %s22, 0
      %p133 = por %p131, %p132
      %p134 = scmp.le.s32.totalorder 1, %s16
      %p135 = scmp.lt.s32.totalorder %s16, 3
      %p136 = pnand %p134, %p135
      %p137 = pneg %p136
      // Predicated region
      $region9: #{tpu_custom_call.1} parent=5 // pred_check
        _
      $region10: #{tpu_custom_call.1} parent=5 // pred_check_branch
        %139 = sbr.rel (%p136) target = $region12
      $region11: #{tpu_custom_call.1} parent=5 // pred_region
        %s140 = ssub.s32 %s16, 1
        // Predicated region
        $region13: #{tpu_custom_call.1} parent=11 // pred_check
          %p141 = pneg %p77
        $region14: #{tpu_custom_call.1} parent=11 // pred_check_branch
          %143 = sbr.rel (%p141) target = $region16
        $region15: #{tpu_custom_call.1} parent=11 // pred_region
          %s145 = ssub.s32 16384, 16384
          %146 = vsyncadd [#allocation6], %s145
          %s147 = sshll.u32 [#allocation5], 4
          %s148 = int_to_ptr.vmem [resolvable:$true] %s147
          %153 = dma.hbm_to_vmem [thread:$0]  %s1, 16384, %s148, [#allocation6], 256, 256, 16
        $region16: #{tpu_custom_call.1} parent=11 // pred_fallthru
          _
        // Predicated region
        $region17: #{tpu_custom_call.1} parent=11 // pred_check
          %p154 = pneg %p98
        $region18: #{tpu_custom_call.1} parent=11 // pred_check_branch
          %156 = sbr.rel (%p154) target = $region20
        $region19: #{tpu_custom_call.1} parent=11 // pred_region
          %s158 = ssub.s32 4096, 4096
          %159 = vsyncadd [#allocation6], %s158
          %s160 = sshll.u32 [#allocation7], 4
          %s161 = int_to_ptr.vmem [resolvable:$true] %s160
          %166 = dma.hbm_to_vmem [thread:$0]  %s2, 4096, %s161, [#allocation6], 64, 64, 4
        $region20: #{tpu_custom_call.1} parent=11 // pred_fallthru
          _
      $region12: #{tpu_custom_call.1} parent=5 // pred_fallthru
        _
      %p167 = scmp.lt.s32.totalorder %s16, 2
      // Predicated region
      $region21: #{tpu_custom_call.1} parent=5 // pred_check
        %p168 = pneg %p167
      $region22: #{tpu_custom_call.1} parent=5 // pred_check_branch
        %170 = sbr.rel (%p168) target = $region24
      $region23: #{tpu_custom_call.1} parent=5 // pred_region
        // Predicated region
        $region25: #{tpu_custom_call.1} parent=23 // pred_check
          %p171 = pneg %p50
        $region26: #{tpu_custom_call.1} parent=23 // pred_check_branch
          %173 = sbr.rel (%p171) target = $region28
        $region27: #{tpu_custom_call.1} parent=23 // pred_region
          %s174 = sand.u32 %s40, 1
          %s175 = scalar_lea.sflag [#allocation3], %s174
          %s176 = sand.u32 %s40, 1
          %s177 = smul.addr %s176, 256
          %s178 = scalar_lea.vmem [#allocation2], %s177
          %s179 = smul.u32 16, %s24
          %s181 = ssub.s32 4096, 4096
          %182 = vsyncadd %s175, %s181
          %s183 = smul.addr %s179, 4
          %s184 = smul.addr %s23, 64
          %s185 = sadd.s32 %s183, %s184
          %s186 = smul.addr %s185, 64
          %s187 = scalar_lea.hbm %s0, %s186
          %s188 = sshll.u32 %s178, 4
          %s189 = int_to_ptr.vmem [resolvable:$true] %s188
          %194 = dma.hbm_to_vmem [thread:$0]  %s187, 4096, %s189, %s175, 256, 256, 16
        $region28: #{tpu_custom_call.1} parent=23 // pred_fallthru
          _
      $region24: #{tpu_custom_call.1} parent=5 // pred_fallthru
        _
      %p195 = scmp.le.s32.totalorder 1, %s16
      %p196 = scmp.lt.s32.totalorder %s16, 3
      %p197 = pnand %p195, %p196
      %p198 = pneg %p197
      // Predicated region
      $region29: #{tpu_custom_call.1} parent=5 // pred_check
        _
      $region30: #{tpu_custom_call.1} parent=5 // pred_check_branch
        %200 = sbr.rel (%p197) target = $region32
      $region31: #{tpu_custom_call.1} parent=5 // pred_region
        %s201 = ssub.s32 %s16, 1
        %s202 = sand.u32 %s43, 1
        %s203 = scalar_lea.sflag [#allocation3], %s202
        %s204 = sand.u32 %s43, 1
        %s205 = smul.addr %s204, 256
        %s206 = scalar_lea.vmem [#allocation2], %s205
        // Predicated region
        $region33: #{tpu_custom_call.1} parent=31 // pred_check
          %p207 = pneg %p56
        $region34: #{tpu_custom_call.1} parent=31 // pred_check_branch
          %209 = sbr.rel (%p207) target = $region36
        $region35: #{tpu_custom_call.1} parent=31 // pred_region
          %210 = dma.done %s203, 4096
        $region36: #{tpu_custom_call.1} parent=31 // pred_fallthru
          _
        // Predicated region
        $region37: #{tpu_custom_call.1} parent=31 // pred_check
          %p211 = pneg %p77
        $region38: #{tpu_custom_call.1} parent=31 // pred_check_branch
          %213 = sbr.rel (%p211) target = $region40
        $region39: #{tpu_custom_call.1} parent=31 // pred_region
          %214 = dma.done [#allocation6], 16384
        $region40: #{tpu_custom_call.1} parent=31 // pred_fallthru
          _
        // Predicated region
        $region41: #{tpu_custom_call.1} parent=31 // pred_check
          %p215 = pneg %p98
        $region42: #{tpu_custom_call.1} parent=31 // pred_check_branch
          %217 = sbr.rel (%p215) target = $region44
        $region43: #{tpu_custom_call.1} parent=31 // pred_region
          %218 = dma.done [#allocation6], 4096
        $region44: #{tpu_custom_call.1} parent=31 // pred_fallthru
          _
        %s219 = sand.u32 %s43, 1
        %s220 = scalar_lea.sflag [#allocation3], %s219
        %s221 = sand.u32 %s43, 1
        %s222 = smul.addr %s221, 256
        %s223 = scalar_lea.vmem [#allocation2], %s222
        %p224 = pneg %p56
        %p225 = pneg %p53
        %p226 = pneg %p77
        %p227 = pneg %p74
        %p228 = pneg %p98
        %p229 = pneg %p95
        %p230 = pneg %p126
        %p231 = pneg %p123
        %s232 = sand.u32 %s113, 1
        %s233 = scalar_lea.sflag [#allocation4], %s232
        %s234 = sand.u32 %s113, 1
        %s235 = smul.addr %s234, 128
        %s236 = scalar_lea.vmem [#allocation8], %s235
        %s237 = smul.u32 16, %s26
        %v239 = vld [vmem:[%s206] sm:$0xff]
        %v240 = vld [vmem:[%s206 + $0x8] sm:$0xff]
        %v241 = vld [vmem:[%s206 + $0x10] sm:$0xff]
        %v242 = vld [vmem:[%s206 + $0x18] sm:$0xff]
        %v243 = vld [vmem:[%s206 + $0x20] sm:$0xff]
        %v244 = vld [vmem:[%s206 + $0x28] sm:$0xff]
        %v245 = vld [vmem:[%s206 + $0x30] sm:$0xff]
        %v246 = vld [vmem:[%s206 + $0x38] sm:$0xff]
        %v247 = vld [vmem:[%s206 + $0x40] sm:$0xff]
        %v248 = vld [vmem:[%s206 + $0x48] sm:$0xff]
        %v249 = vld [vmem:[%s206 + $0x50] sm:$0xff]
        %v250 = vld [vmem:[%s206 + $0x58] sm:$0xff]
        %v251 = vld [vmem:[%s206 + $0x60] sm:$0xff]
        %v252 = vld [vmem:[%s206 + $0x68] sm:$0xff]
        %v253 = vld [vmem:[%s206 + $0x70] sm:$0xff]
        %v254 = vld [vmem:[%s206 + $0x78] sm:$0xff]
        %v255 = vld [vmem:[%s206 + $0x80] sm:$0xff]
        %v256 = vld [vmem:[%s206 + $0x88] sm:$0xff]
        %v257 = vld [vmem:[%s206 + $0x90] sm:$0xff]
        %v258 = vld [vmem:[%s206 + $0x98] sm:$0xff]
        %v259 = vld [vmem:[%s206 + $0xa0] sm:$0xff]
        %v260 = vld [vmem:[%s206 + $0xa8] sm:$0xff]
        %v261 = vld [vmem:[%s206 + $0xb0] sm:$0xff]
        %v262 = vld [vmem:[%s206 + $0xb8] sm:$0xff]
        %v263 = vld [vmem:[%s206 + $0xc0] sm:$0xff]
        %v264 = vld [vmem:[%s206 + $0xc8] sm:$0xff]
        %v265 = vld [vmem:[%s206 + $0xd0] sm:$0xff]
        %v266 = vld [vmem:[%s206 + $0xd8] sm:$0xff]
        %v267 = vld [vmem:[%s206 + $0xe0] sm:$0xff]
        %v268 = vld [vmem:[%s206 + $0xe8] sm:$0xff]
        %v269 = vld [vmem:[%s206 + $0xf0] sm:$0xff]
        %v270 = vld [vmem:[%s206 + $0xf8] sm:$0xff]
        %v271 = vld [vmem:[#allocation5] sm:$0xff]
        %v272 = vld [vmem:[#allocation5 + $0x8] sm:$0xff]
        %v273 = vld [vmem:[#allocation5 + $0x10] sm:$0xff]
        %v274 = vld [vmem:[#allocation5 + $0x18] sm:$0xff]
        %v275 = vld [vmem:[#allocation5 + $0x20] sm:$0xff]
        %v276 = vld [vmem:[#allocation5 + $0x28] sm:$0xff]
        %v277 = vld [vmem:[#allocation5 + $0x30] sm:$0xff]
        %v278 = vld [vmem:[#allocation5 + $0x38] sm:$0xff]
        %v279 = vld [vmem:[#allocation5 + $0x40] sm:$0xff]
        %v280 = vld [vmem:[#allocation5 + $0x48] sm:$0xff]
        %v281 = vld [vmem:[#allocation5 + $0x50] sm:$0xff]
        %v282 = vld [vmem:[#allocation5 + $0x58] sm:$0xff]
        %v283 = vld [vmem:[#allocation5 + $0x60] sm:$0xff]
        %v284 = vld [vmem:[#allocation5 + $0x68] sm:$0xff]
        %v285 = vld [vmem:[#allocation5 + $0x70] sm:$0xff]
        %v286 = vld [vmem:[#allocation5 + $0x78] sm:$0xff]
        %v287 = vld [vmem:[#allocation5 + $0x80] sm:$0xff]
        %v288 = vld [vmem:[#allocation5 + $0x88] sm:$0xff]
        %v289 = vld [vmem:[#allocation5 + $0x90] sm:$0xff]
        %v290 = vld [vmem:[#allocation5 + $0x98] sm:$0xff]
        %v291 = vld [vmem:[#allocation5 + $0xa0] sm:$0xff]
        %v292 = vld [vmem:[#allocation5 + $0xa8] sm:$0xff]
        %v293 = vld [vmem:[#allocation5 + $0xb0] sm:$0xff]
        %v294 = vld [vmem:[#allocation5 + $0xb8] sm:$0xff]
        %v295 = vld [vmem:[#allocation5 + $0xc0] sm:$0xff]
        %v296 = vld [vmem:[#allocation5 + $0xc8] sm:$0xff]
        %v297 = vld [vmem:[#allocation5 + $0xd0] sm:$0xff]
        %v298 = vld [vmem:[#allocation5 + $0xd8] sm:$0xff]
        %v299 = vld [vmem:[#allocation5 + $0xe0] sm:$0xff]
        %v300 = vld [vmem:[#allocation5 + $0xe8] sm:$0xff]
        %v301 = vld [vmem:[#allocation5 + $0xf0] sm:$0xff]
        %v302 = vld [vmem:[#allocation5 + $0xf8] sm:$0xff]
        %v303 = vld [vmem:[#allocation5 + $0x100] sm:$0xff]
        %v304 = vld [vmem:[#allocation5 + $0x108] sm:$0xff]
        %v305 = vld [vmem:[#allocation5 + $0x110] sm:$0xff]
        %v306 = vld [vmem:[#allocation5 + $0x118] sm:$0xff]
        %v307 = vld [vmem:[#allocation5 + $0x120] sm:$0xff]
        %v308 = vld [vmem:[#allocation5 + $0x128] sm:$0xff]
        %v309 = vld [vmem:[#allocation5 + $0x130] sm:$0xff]
        %v310 = vld [vmem:[#allocation5 + $0x138] sm:$0xff]
        %v311 = vld [vmem:[#allocation5 + $0x140] sm:$0xff]
        %v312 = vld [vmem:[#allocation5 + $0x148] sm:$0xff]
        %v313 = vld [vmem:[#allocation5 + $0x150] sm:$0xff]
        %v314 = vld [vmem:[#allocation5 + $0x158] sm:$0xff]
        %v315 = vld [vmem:[#allocation5 + $0x160] sm:$0xff]
        %v316 = vld [vmem:[#allocation5 + $0x168] sm:$0xff]
        %v317 = vld [vmem:[#allocation5 + $0x170] sm:$0xff]
        %v318 = vld [vmem:[#allocation5 + $0x178] sm:$0xff]
        %v319 = vld [vmem:[#allocation5 + $0x180] sm:$0xff]
        %v320 = vld [vmem:[#allocation5 + $0x188] sm:$0xff]
        %v321 = vld [vmem:[#allocation5 + $0x190] sm:$0xff]
        %v322 = vld [vmem:[#allocation5 + $0x198] sm:$0xff]
        %v323 = vld [vmem:[#allocation5 + $0x1a0] sm:$0xff]
        %v324 = vld [vmem:[#allocation5 + $0x1a8] sm:$0xff]
        %v325 = vld [vmem:[#allocation5 + $0x1b0] sm:$0xff]
        %v326 = vld [vmem:[#allocation5 + $0x1b8] sm:$0xff]
        %v327 = vld [vmem:[#allocation5 + $0x1c0] sm:$0xff]
        %v328 = vld [vmem:[#allocation5 + $0x1c8] sm:$0xff]
        %v329 = vld [vmem:[#allocation5 + $0x1d0] sm:$0xff]
        %v330 = vld [vmem:[#allocation5 + $0x1d8] sm:$0xff]
        %v331 = vld [vmem:[#allocation5 + $0x1e0] sm:$0xff]
        %v332 = vld [vmem:[#allocation5 + $0x1e8] sm:$0xff]
        %v333 = vld [vmem:[#allocation5 + $0x1f0] sm:$0xff]
        %v334 = vld [vmem:[#allocation5 + $0x1f8] sm:$0xff]
        %v335 = vld [vmem:[#allocation5 + $0x200] sm:$0xff]
        %v336 = vld [vmem:[#allocation5 + $0x208] sm:$0xff]
        %v337 = vld [vmem:[#allocation5 + $0x210] sm:$0xff]
        %v338 = vld [vmem:[#allocation5 + $0x218] sm:$0xff]
        %v339 = vld [vmem:[#allocation5 + $0x220] sm:$0xff]
        %v340 = vld [vmem:[#allocation5 + $0x228] sm:$0xff]
        %v341 = vld [vmem:[#allocation5 + $0x230] sm:$0xff]
        %v342 = vld [vmem:[#allocation5 + $0x238] sm:$0xff]
        %v343 = vld [vmem:[#allocation5 + $0x240] sm:$0xff]
        %v344 = vld [vmem:[#allocation5 + $0x248] sm:$0xff]
        %v345 = vld [vmem:[#allocation5 + $0x250] sm:$0xff]
        %v346 = vld [vmem:[#allocation5 + $0x258] sm:$0xff]
        %v347 = vld [vmem:[#allocation5 + $0x260] sm:$0xff]
        %v348 = vld [vmem:[#allocation5 + $0x268] sm:$0xff]
        %v349 = vld [vmem:[#allocation5 + $0x270] sm:$0xff]
        %v350 = vld [vmem:[#allocation5 + $0x278] sm:$0xff]
        %v351 = vld [vmem:[#allocation5 + $0x280] sm:$0xff]
        %v352 = vld [vmem:[#allocation5 + $0x288] sm:$0xff]
        %v353 = vld [vmem:[#allocation5 + $0x290] sm:$0xff]
        %v354 = vld [vmem:[#allocation5 + $0x298] sm:$0xff]
        %v355 = vld [vmem:[#allocation5 + $0x2a0] sm:$0xff]
        %v356 = vld [vmem:[#allocation5 + $0x2a8] sm:$0xff]
        %v357 = vld [vmem:[#allocation5 + $0x2b0] sm:$0xff]
        %v358 = vld [vmem:[#allocation5 + $0x2b8] sm:$0xff]
        %v359 = vld [vmem:[#allocation5 + $0x2c0] sm:$0xff]
        %v360 = vld [vmem:[#allocation5 + $0x2c8] sm:$0xff]
        %v361 = vld [vmem:[#allocation5 + $0x2d0] sm:$0xff]
        %v362 = vld [vmem:[#allocation5 + $0x2d8] sm:$0xff]
        %v363 = vld [vmem:[#allocation5 + $0x2e0] sm:$0xff]
        %v364 = vld [vmem:[#allocation5 + $0x2e8] sm:$0xff]
        %v365 = vld [vmem:[#allocation5 + $0x2f0] sm:$0xff]
        %v366 = vld [vmem:[#allocation5 + $0x2f8] sm:$0xff]
        %v367 = vld [vmem:[#allocation5 + $0x300] sm:$0xff]
        %v368 = vld [vmem:[#allocation5 + $0x308] sm:$0xff]
        %v369 = vld [vmem:[#allocation5 + $0x310] sm:$0xff]
        %v370 = vld [vmem:[#allocation5 + $0x318] sm:$0xff]
        %v371 = vld [vmem:[#allocation5 + $0x320] sm:$0xff]
        %v372 = vld [vmem:[#allocation5 + $0x328] sm:$0xff]
        %v373 = vld [vmem:[#allocation5 + $0x330] sm:$0xff]
        %v374 = vld [vmem:[#allocation5 + $0x338] sm:$0xff]
        %v375 = vld [vmem:[#allocation5 + $0x340] sm:$0xff]
        %v376 = vld [vmem:[#allocation5 + $0x348] sm:$0xff]
        %v377 = vld [vmem:[#allocation5 + $0x350] sm:$0xff]
        %v378 = vld [vmem:[#allocation5 + $0x358] sm:$0xff]
        %v379 = vld [vmem:[#allocation5 + $0x360] sm:$0xff]
        %v380 = vld [vmem:[#allocation5 + $0x368] sm:$0xff]
        %v381 = vld [vmem:[#allocation5 + $0x370] sm:$0xff]
        %v382 = vld [vmem:[#allocation5 + $0x378] sm:$0xff]
        %v383 = vld [vmem:[#allocation5 + $0x380] sm:$0xff]
        %v384 = vld [vmem:[#allocation5 + $0x388] sm:$0xff]
        %v385 = vld [vmem:[#allocation5 + $0x390] sm:$0xff]
        %v386 = vld [vmem:[#allocation5 + $0x398] sm:$0xff]
        %v387 = vld [vmem:[#allocation5 + $0x3a0] sm:$0xff]
        %v388 = vld [vmem:[#allocation5 + $0x3a8] sm:$0xff]
        %v389 = vld [vmem:[#allocation5 + $0x3b0] sm:$0xff]
        %v390 = vld [vmem:[#allocation5 + $0x3b8] sm:$0xff]
        %v391 = vld [vmem:[#allocation5 + $0x3c0] sm:$0xff]
        %v392 = vld [vmem:[#allocation5 + $0x3c8] sm:$0xff]
        %v393 = vld [vmem:[#allocation5 + $0x3d0] sm:$0xff]
        %v394 = vld [vmem:[#allocation5 + $0x3d8] sm:$0xff]
        %v395 = vld [vmem:[#allocation5 + $0x3e0] sm:$0xff]
        %v396 = vld [vmem:[#allocation5 + $0x3e8] sm:$0xff]
        %v397 = vld [vmem:[#allocation5 + $0x3f0] sm:$0xff]
        %v398 = vld [vmem:[#allocation5 + $0x3f8] sm:$0xff]
        %v431 = vunpack.c.l.b16 %v239
        %v432 = vunpack.c.h.b16 %v239
        %v433 = vunpack.c.l.b16 %v240
        %v434 = vunpack.c.h.b16 %v240
        %v435 = vunpack.c.l.b16 %v241
        %v436 = vunpack.c.h.b16 %v241
        %v437 = vunpack.c.l.b16 %v242
        %v438 = vunpack.c.h.b16 %v242
        %v439 = vunpack.c.l.b16 %v243
        %v440 = vunpack.c.h.b16 %v243
        %v441 = vunpack.c.l.b16 %v244
        %v442 = vunpack.c.h.b16 %v244
        %v443 = vunpack.c.l.b16 %v245
        %v444 = vunpack.c.h.b16 %v245
        %v445 = vunpack.c.l.b16 %v246
        %v446 = vunpack.c.h.b16 %v246
        %v447 = vunpack.c.l.b16 %v247
        %v448 = vunpack.c.h.b16 %v247
        %v449 = vunpack.c.l.b16 %v248
        %v450 = vunpack.c.h.b16 %v248
        %v451 = vunpack.c.l.b16 %v249
        %v452 = vunpack.c.h.b16 %v249
        %v453 = vunpack.c.l.b16 %v250
        %v454 = vunpack.c.h.b16 %v250
        %v455 = vunpack.c.l.b16 %v251
        %v456 = vunpack.c.h.b16 %v251
        %v457 = vunpack.c.l.b16 %v252
        %v458 = vunpack.c.h.b16 %v252
        %v459 = vunpack.c.l.b16 %v253
        %v460 = vunpack.c.h.b16 %v253
        %v461 = vunpack.c.l.b16 %v254
        %v462 = vunpack.c.h.b16 %v254
        %v463 = vunpack.c.l.b16 %v255
        %v464 = vunpack.c.h.b16 %v255
        %v465 = vunpack.c.l.b16 %v256
        %v466 = vunpack.c.h.b16 %v256
        %v467 = vunpack.c.l.b16 %v257
        %v468 = vunpack.c.h.b16 %v257
        %v469 = vunpack.c.l.b16 %v258
        %v470 = vunpack.c.h.b16 %v258
        %v471 = vunpack.c.l.b16 %v259
        %v472 = vunpack.c.h.b16 %v259
        %v473 = vunpack.c.l.b16 %v260
        %v474 = vunpack.c.h.b16 %v260
        %v475 = vunpack.c.l.b16 %v261
        %v476 = vunpack.c.h.b16 %v261
        %v477 = vunpack.c.l.b16 %v262
        %v478 = vunpack.c.h.b16 %v262
        %v479 = vunpack.c.l.b16 %v263
        %v480 = vunpack.c.h.b16 %v263
        %v481 = vunpack.c.l.b16 %v264
        %v482 = vunpack.c.h.b16 %v264
        %v483 = vunpack.c.l.b16 %v265
        %v484 = vunpack.c.h.b16 %v265
        %v485 = vunpack.c.l.b16 %v266
        %v486 = vunpack.c.h.b16 %v266
        %v487 = vunpack.c.l.b16 %v267
        %v488 = vunpack.c.h.b16 %v267
        %v489 = vunpack.c.l.b16 %v268
        %v490 = vunpack.c.h.b16 %v268
        %v491 = vunpack.c.l.b16 %v269
        %v492 = vunpack.c.h.b16 %v269
        %v493 = vunpack.c.l.b16 %v270
        %v494 = vunpack.c.h.b16 %v270
        %v495 = vpack.c.b16 %v435, %v431
        %v496 = vpack.c.b16 %v436, %v432
        %v497 = vpack.c.b16 %v437, %v433
        %v498 = vpack.c.b16 %v438, %v434
        %v499 = vpack.c.b16 %v443, %v439
        %v500 = vpack.c.b16 %v444, %v440
        %v501 = vpack.c.b16 %v445, %v441
        %v502 = vpack.c.b16 %v446, %v442
        %v503 = vpack.c.b16 %v451, %v447
        %v504 = vpack.c.b16 %v452, %v448
        %v505 = vpack.c.b16 %v453, %v449
        %v506 = vpack.c.b16 %v454, %v450
        %v507 = vpack.c.b16 %v459, %v455
        %v508 = vpack.c.b16 %v460, %v456
        %v509 = vpack.c.b16 %v461, %v457
        %v510 = vpack.c.b16 %v462, %v458
        %v511 = vpack.c.b16 %v467, %v463
        %v512 = vpack.c.b16 %v468, %v464
        %v513 = vpack.c.b16 %v469, %v465
        %v514 = vpack.c.b16 %v470, %v466
        %v515 = vpack.c.b16 %v475, %v471
        %v516 = vpack.c.b16 %v476, %v472
        %v517 = vpack.c.b16 %v477, %v473
        %v518 = vpack.c.b16 %v478, %v474
        %v519 = vpack.c.b16 %v483, %v479
        %v520 = vpack.c.b16 %v484, %v480
        %v521 = vpack.c.b16 %v485, %v481
        %v522 = vpack.c.b16 %v486, %v482
        %v523 = vpack.c.b16 %v491, %v487
        %v524 = vpack.c.b16 %v492, %v488
        %v525 = vpack.c.b16 %v493, %v489
        %v526 = vpack.c.b16 %v494, %v490
        %v687 = vunpack.c.l.b16 %v271
        %v688 = vunpack.c.h.b16 %v271
        %v689 = vunpack.c.l.b16 %v272
        %v690 = vunpack.c.h.b16 %v272
        %v691 = vunpack.c.l.b16 %v273
        %v692 = vunpack.c.h.b16 %v273
        %v693 = vunpack.c.l.b16 %v274
        %v694 = vunpack.c.h.b16 %v274
        %v695 = vunpack.c.l.b16 %v275
        %v696 = vunpack.c.h.b16 %v275
        %v697 = vunpack.c.l.b16 %v276
        %v698 = vunpack.c.h.b16 %v276
        %v699 = vunpack.c.l.b16 %v277
        %v700 = vunpack.c.h.b16 %v277
        %v701 = vunpack.c.l.b16 %v278
        %v702 = vunpack.c.h.b16 %v278
        %v703 = vunpack.c.l.b16 %v279
        %v704 = vunpack.c.h.b16 %v279
        %v705 = vunpack.c.l.b16 %v280
        %v706 = vunpack.c.h.b16 %v280
        %v707 = vunpack.c.l.b16 %v281
        %v708 = vunpack.c.h.b16 %v281
        %v709 = vunpack.c.l.b16 %v282
        %v710 = vunpack.c.h.b16 %v282
        %v711 = vunpack.c.l.b16 %v283
        %v712 = vunpack.c.h.b16 %v283
        %v713 = vunpack.c.l.b16 %v284
        %v714 = vunpack.c.h.b16 %v284
        %v715 = vunpack.c.l.b16 %v285
        %v716 = vunpack.c.h.b16 %v285
        %v717 = vunpack.c.l.b16 %v286
        %v718 = vunpack.c.h.b16 %v286
        %v719 = vunpack.c.l.b16 %v287
        %v720 = vunpack.c.h.b16 %v287
        %v721 = vunpack.c.l.b16 %v288
        %v722 = vunpack.c.h.b16 %v288
        %v723 = vunpack.c.l.b16 %v289
        %v724 = vunpack.c.h.b16 %v289
        %v725 = vunpack.c.l.b16 %v290
        %v726 = vunpack.c.h.b16 %v290
        %v727 = vunpack.c.l.b16 %v291
        %v728 = vunpack.c.h.b16 %v291
        %v729 = vunpack.c.l.b16 %v292
        %v730 = vunpack.c.h.b16 %v292
        %v731 = vunpack.c.l.b16 %v293
        %v732 = vunpack.c.h.b16 %v293
        %v733 = vunpack.c.l.b16 %v294
        %v734 = vunpack.c.h.b16 %v294
        %v735 = vunpack.c.l.b16 %v295
        %v736 = vunpack.c.h.b16 %v295
        %v737 = vunpack.c.l.b16 %v296
        %v738 = vunpack.c.h.b16 %v296
        %v739 = vunpack.c.l.b16 %v297
        %v740 = vunpack.c.h.b16 %v297
        %v741 = vunpack.c.l.b16 %v298
        %v742 = vunpack.c.h.b16 %v298
        %v743 = vunpack.c.l.b16 %v299
        %v744 = vunpack.c.h.b16 %v299
        %v745 = vunpack.c.l.b16 %v300
        %v746 = vunpack.c.h.b16 %v300
        %v747 = vunpack.c.l.b16 %v301
        %v748 = vunpack.c.h.b16 %v301
        %v749 = vunpack.c.l.b16 %v302
        %v750 = vunpack.c.h.b16 %v302
        %v751 = vunpack.c.l.b16 %v303
        %v752 = vunpack.c.h.b16 %v303
        %v753 = vunpack.c.l.b16 %v304
        %v754 = vunpack.c.h.b16 %v304
        %v755 = vunpack.c.l.b16 %v305
        %v756 = vunpack.c.h.b16 %v305
        %v757 = vunpack.c.l.b16 %v306
        %v758 = vunpack.c.h.b16 %v306
        %v759 = vunpack.c.l.b16 %v307
        %v760 = vunpack.c.h.b16 %v307
        %v761 = vunpack.c.l.b16 %v308
        %v762 = vunpack.c.h.b16 %v308
        %v763 = vunpack.c.l.b16 %v309
        %v764 = vunpack.c.h.b16 %v309
        %v765 = vunpack.c.l.b16 %v310
        %v766 = vunpack.c.h.b16 %v310
        %v767 = vunpack.c.l.b16 %v311
        %v768 = vunpack.c.h.b16 %v311
        %v769 = vunpack.c.l.b16 %v312
        %v770 = vunpack.c.h.b16 %v312
        %v771 = vunpack.c.l.b16 %v313
        %v772 = vunpack.c.h.b16 %v313
        %v773 = vunpack.c.l.b16 %v314
        %v774 = vunpack.c.h.b16 %v314
        %v775 = vunpack.c.l.b16 %v315
        %v776 = vunpack.c.h.b16 %v315
        %v777 = vunpack.c.l.b16 %v316
        %v778 = vunpack.c.h.b16 %v316
        %v779 = vunpack.c.l.b16 %v317
        %v780 = vunpack.c.h.b16 %v317
        %v781 = vunpack.c.l.b16 %v318
        %v782 = vunpack.c.h.b16 %v318
        %v783 = vunpack.c.l.b16 %v319
        %v784 = vunpack.c.h.b16 %v319
        %v785 = vunpack.c.l.b16 %v320
        %v786 = vunpack.c.h.b16 %v320
        %v787 = vunpack.c.l.b16 %v321
        %v788 = vunpack.c.h.b16 %v321
        %v789 = vunpack.c.l.b16 %v322
        %v790 = vunpack.c.h.b16 %v322
        %v791 = vunpack.c.l.b16 %v323
        %v792 = vunpack.c.h.b16 %v323
        %v793 = vunpack.c.l.b16 %v324
        %v794 = vunpack.c.h.b16 %v324
        %v795 = vunpack.c.l.b16 %v325
        %v796 = vunpack.c.h.b16 %v325
        %v797 = vunpack.c.l.b16 %v326
        %v798 = vunpack.c.h.b16 %v326
        %v799 = vunpack.c.l.b16 %v327
        %v800 = vunpack.c.h.b16 %v327
        %v801 = vunpack.c.l.b16 %v328
        %v802 = vunpack.c.h.b16 %v328
        %v803 = vunpack.c.l.b16 %v329
        %v804 = vunpack.c.h.b16 %v329
        %v805 = vunpack.c.l.b16 %v330
        %v806 = vunpack.c.h.b16 %v330
        %v807 = vunpack.c.l.b16 %v331
        %v808 = vunpack.c.h.b16 %v331
        %v809 = vunpack.c.l.b16 %v332
        %v810 = vunpack.c.h.b16 %v332
        %v811 = vunpack.c.l.b16 %v333
        %v812 = vunpack.c.h.b16 %v333
        %v813 = vunpack.c.l.b16 %v334
        %v814 = vunpack.c.h.b16 %v334
        %v815 = vunpack.c.l.b16 %v335
        %v816 = vunpack.c.h.b16 %v335
        %v817 = vunpack.c.l.b16 %v336
        %v818 = vunpack.c.h.b16 %v336
        %v819 = vunpack.c.l.b16 %v337
        %v820 = vunpack.c.h.b16 %v337
        %v821 = vunpack.c.l.b16 %v338
        %v822 = vunpack.c.h.b16 %v338
        %v823 = vunpack.c.l.b16 %v339
        %v824 = vunpack.c.h.b16 %v339
        %v825 = vunpack.c.l.b16 %v340
        %v826 = vunpack.c.h.b16 %v340
        %v827 = vunpack.c.l.b16 %v341
        %v828 = vunpack.c.h.b16 %v341
        %v829 = vunpack.c.l.b16 %v342
        %v830 = vunpack.c.h.b16 %v342
        %v831 = vunpack.c.l.b16 %v343
        %v832 = vunpack.c.h.b16 %v343
        %v833 = vunpack.c.l.b16 %v344
        %v834 = vunpack.c.h.b16 %v344
        %v835 = vunpack.c.l.b16 %v345
        %v836 = vunpack.c.h.b16 %v345
        %v837 = vunpack.c.l.b16 %v346
        %v838 = vunpack.c.h.b16 %v346
        %v839 = vunpack.c.l.b16 %v347
        %v840 = vunpack.c.h.b16 %v347
        %v841 = vunpack.c.l.b16 %v348
        %v842 = vunpack.c.h.b16 %v348
        %v843 = vunpack.c.l.b16 %v349
        %v844 = vunpack.c.h.b16 %v349
        %v845 = vunpack.c.l.b16 %v350
        %v846 = vunpack.c.h.b16 %v350
        %v847 = vunpack.c.l.b16 %v351
        %v848 = vunpack.c.h.b16 %v351
        %v849 = vunpack.c.l.b16 %v352
        %v850 = vunpack.c.h.b16 %v352
        %v851 = vunpack.c.l.b16 %v353
        %v852 = vunpack.c.h.b16 %v353
        %v853 = vunpack.c.l.b16 %v354
        %v854 = vunpack.c.h.b16 %v354
        %v855 = vunpack.c.l.b16 %v355
        %v856 = vunpack.c.h.b16 %v355
        %v857 = vunpack.c.l.b16 %v356
        %v858 = vunpack.c.h.b16 %v356
        %v859 = vunpack.c.l.b16 %v357
        %v860 = vunpack.c.h.b16 %v357
        %v861 = vunpack.c.l.b16 %v358
        %v862 = vunpack.c.h.b16 %v358
        %v863 = vunpack.c.l.b16 %v359
        %v864 = vunpack.c.h.b16 %v359
        %v865 = vunpack.c.l.b16 %v360
        %v866 = vunpack.c.h.b16 %v360
        %v867 = vunpack.c.l.b16 %v361
        %v868 = vunpack.c.h.b16 %v361
        %v869 = vunpack.c.l.b16 %v362
        %v870 = vunpack.c.h.b16 %v362
        %v871 = vunpack.c.l.b16 %v363
        %v872 = vunpack.c.h.b16 %v363
        %v873 = vunpack.c.l.b16 %v364
        %v874 = vunpack.c.h.b16 %v364
        %v875 = vunpack.c.l.b16 %v365
        %v876 = vunpack.c.h.b16 %v365
        %v877 = vunpack.c.l.b16 %v366
        %v878 = vunpack.c.h.b16 %v366
        %v879 = vunpack.c.l.b16 %v367
        %v880 = vunpack.c.h.b16 %v367
        %v881 = vunpack.c.l.b16 %v368
        %v882 = vunpack.c.h.b16 %v368
        %v883 = vunpack.c.l.b16 %v369
        %v884 = vunpack.c.h.b16 %v369
        %v885 = vunpack.c.l.b16 %v370
        %v886 = vunpack.c.h.b16 %v370
        %v887 = vunpack.c.l.b16 %v371
        %v888 = vunpack.c.h.b16 %v371
        %v889 = vunpack.c.l.b16 %v372
        %v890 = vunpack.c.h.b16 %v372
        %v891 = vunpack.c.l.b16 %v373
        %v892 = vunpack.c.h.b16 %v373
        %v893 = vunpack.c.l.b16 %v374
        %v894 = vunpack.c.h.b16 %v374
        %v895 = vunpack.c.l.b16 %v375
        %v896 = vunpack.c.h.b16 %v375
        %v897 = vunpack.c.l.b16 %v376
        %v898 = vunpack.c.h.b16 %v376
        %v899 = vunpack.c.l.b16 %v377
        %v900 = vunpack.c.h.b16 %v377
        %v901 = vunpack.c.l.b16 %v378
        %v902 = vunpack.c.h.b16 %v378
        %v903 = vunpack.c.l.b16 %v379
        %v904 = vunpack.c.h.b16 %v379
        %v905 = vunpack.c.l.b16 %v380
        %v906 = vunpack.c.h.b16 %v380
        %v907 = vunpack.c.l.b16 %v381
        %v908 = vunpack.c.h.b16 %v381
        %v909 = vunpack.c.l.b16 %v382
        %v910 = vunpack.c.h.b16 %v382
        %v911 = vunpack.c.l.b16 %v383
        %v912 = vunpack.c.h.b16 %v383
        %v913 = vunpack.c.l.b16 %v384
        %v914 = vunpack.c.h.b16 %v384
        %v915 = vunpack.c.l.b16 %v385
        %v916 = vunpack.c.h.b16 %v385
        %v917 = vunpack.c.l.b16 %v386
        %v918 = vunpack.c.h.b16 %v386
        %v919 = vunpack.c.l.b16 %v387
        %v920 = vunpack.c.h.b16 %v387
        %v921 = vunpack.c.l.b16 %v388
        %v922 = vunpack.c.h.b16 %v388
        %v923 = vunpack.c.l.b16 %v389
        %v924 = vunpack.c.h.b16 %v389
        %v925 = vunpack.c.l.b16 %v390
        %v926 = vunpack.c.h.b16 %v390
        %v927 = vunpack.c.l.b16 %v391
        %v928 = vunpack.c.h.b16 %v391
        %v929 = vunpack.c.l.b16 %v392
        %v930 = vunpack.c.h.b16 %v392
        %v931 = vunpack.c.l.b16 %v393
        %v932 = vunpack.c.h.b16 %v393
        %v933 = vunpack.c.l.b16 %v394
        %v934 = vunpack.c.h.b16 %v394
        %v935 = vunpack.c.l.b16 %v395
        %v936 = vunpack.c.h.b16 %v395
        %v937 = vunpack.c.l.b16 %v396
        %v938 = vunpack.c.h.b16 %v396
        %v939 = vunpack.c.l.b16 %v397
        %v940 = vunpack.c.h.b16 %v397
        %v941 = vunpack.c.l.b16 %v398
        %v942 = vunpack.c.h.b16 %v398
        %v943 = vpack.c.b16 %v691, %v687
        %v944 = vpack.c.b16 %v692, %v688
        %v945 = vpack.c.b16 %v693, %v689
        %v946 = vpack.c.b16 %v694, %v690
        %v947 = vpack.c.b16 %v699, %v695
        %v948 = vpack.c.b16 %v700, %v696
        %v949 = vpack.c.b16 %v701, %v697
        %v950 = vpack.c.b16 %v702, %v698
        %v951 = vpack.c.b16 %v707, %v703
        %v952 = vpack.c.b16 %v708, %v704
        %v953 = vpack.c.b16 %v709, %v705
        %v954 = vpack.c.b16 %v710, %v706
        %v955 = vpack.c.b16 %v715, %v711
        %v956 = vpack.c.b16 %v716, %v712
        %v957 = vpack.c.b16 %v717, %v713
        %v958 = vpack.c.b16 %v718, %v714
        %v959 = vpack.c.b16 %v723, %v719
        %v960 = vpack.c.b16 %v724, %v720
        %v961 = vpack.c.b16 %v725, %v721
        %v962 = vpack.c.b16 %v726, %v722
        %v963 = vpack.c.b16 %v731, %v727
        %v964 = vpack.c.b16 %v732, %v728
        %v965 = vpack.c.b16 %v733, %v729
        %v966 = vpack.c.b16 %v734, %v730
        %v967 = vpack.c.b16 %v739, %v735
        %v968 = vpack.c.b16 %v740, %v736
        %v969 = vpack.c.b16 %v741, %v737
        %v970 = vpack.c.b16 %v742, %v738
        %v971 = vpack.c.b16 %v747, %v743
        %v972 = vpack.c.b16 %v748, %v744
        %v973 = vpack.c.b16 %v749, %v745
        %v974 = vpack.c.b16 %v750, %v746
        %v975 = vpack.c.b16 %v755, %v751
        %v976 = vpack.c.b16 %v756, %v752
        %v977 = vpack.c.b16 %v757, %v753
        %v978 = vpack.c.b16 %v758, %v754
        %v979 = vpack.c.b16 %v763, %v759
        %v980 = vpack.c.b16 %v764, %v760
        %v981 = vpack.c.b16 %v765, %v761
        %v982 = vpack.c.b16 %v766, %v762
        %v983 = vpack.c.b16 %v771, %v767
        %v984 = vpack.c.b16 %v772, %v768
        %v985 = vpack.c.b16 %v773, %v769
        %v986 = vpack.c.b16 %v774, %v770
        %v987 = vpack.c.b16 %v779, %v775
        %v988 = vpack.c.b16 %v780, %v776
        %v989 = vpack.c.b16 %v781, %v777
        %v990 = vpack.c.b16 %v782, %v778
        %v991 = vpack.c.b16 %v787, %v783
        %v992 = vpack.c.b16 %v788, %v784
        %v993 = vpack.c.b16 %v789, %v785
        %v994 = vpack.c.b16 %v790, %v786
        %v995 = vpack.c.b16 %v795, %v791
        %v996 = vpack.c.b16 %v796, %v792
        %v997 = vpack.c.b16 %v797, %v793
        %v998 = vpack.c.b16 %v798, %v794
        %v999 = vpack.c.b16 %v803, %v799
        %v1000 = vpack.c.b16 %v804, %v800
        %v1001 = vpack.c.b16 %v805, %v801
        %v1002 = vpack.c.b16 %v806, %v802
        %v1003 = vpack.c.b16 %v811, %v807
        %v1004 = vpack.c.b16 %v812, %v808
        %v1005 = vpack.c.b16 %v813, %v809
        %v1006 = vpack.c.b16 %v814, %v810
        %v1007 = vpack.c.b16 %v819, %v815
        %v1008 = vpack.c.b16 %v820, %v816
        %v1009 = vpack.c.b16 %v821, %v817
        %v1010 = vpack.c.b16 %v822, %v818
        %v1011 = vpack.c.b16 %v827, %v823
        %v1012 = vpack.c.b16 %v828, %v824
        %v1013 = vpack.c.b16 %v829, %v825
        %v1014 = vpack.c.b16 %v830, %v826
        %v1015 = vpack.c.b16 %v835, %v831
        %v1016 = vpack.c.b16 %v836, %v832
        %v1017 = vpack.c.b16 %v837, %v833
        %v1018 = vpack.c.b16 %v838, %v834
        %v1019 = vpack.c.b16 %v843, %v839
        %v1020 = vpack.c.b16 %v844, %v840
        %v1021 = vpack.c.b16 %v845, %v841
        %v1022 = vpack.c.b16 %v846, %v842
        %v1023 = vpack.c.b16 %v851, %v847
        %v1024 = vpack.c.b16 %v852, %v848
        %v1025 = vpack.c.b16 %v853, %v849
        %v1026 = vpack.c.b16 %v854, %v850
        %v1027 = vpack.c.b16 %v859, %v855
        %v1028 = vpack.c.b16 %v860, %v856
        %v1029 = vpack.c.b16 %v861, %v857
        %v1030 = vpack.c.b16 %v862, %v858
        %v1031 = vpack.c.b16 %v867, %v863
        %v1032 = vpack.c.b16 %v868, %v864
        %v1033 = vpack.c.b16 %v869, %v865
        %v1034 = vpack.c.b16 %v870, %v866
        %v1035 = vpack.c.b16 %v875, %v871
        %v1036 = vpack.c.b16 %v876, %v872
        %v1037 = vpack.c.b16 %v877, %v873
        %v1038 = vpack.c.b16 %v878, %v874
        %v1039 = vpack.c.b16 %v883, %v879
        %v1040 = vpack.c.b16 %v884, %v880
        %v1041 = vpack.c.b16 %v885, %v881
        %v1042 = vpack.c.b16 %v886, %v882
        %v1043 = vpack.c.b16 %v891, %v887
        %v1044 = vpack.c.b16 %v892, %v888
        %v1045 = vpack.c.b16 %v893, %v889
        %v1046 = vpack.c.b16 %v894, %v890
        %v1047 = vpack.c.b16 %v899, %v895
        %v1048 = vpack.c.b16 %v900, %v896
        %v1049 = vpack.c.b16 %v901, %v897
        %v1050 = vpack.c.b16 %v902, %v898
        %v1051 = vpack.c.b16 %v907, %v903
        %v1052 = vpack.c.b16 %v908, %v904
        %v1053 = vpack.c.b16 %v909, %v905
        %v1054 = vpack.c.b16 %v910, %v906
        %v1055 = vpack.c.b16 %v915, %v911
        %v1056 = vpack.c.b16 %v916, %v912
        %v1057 = vpack.c.b16 %v917, %v913
        %v1058 = vpack.c.b16 %v918, %v914
        %v1059 = vpack.c.b16 %v923, %v919
        %v1060 = vpack.c.b16 %v924, %v920
        %v1061 = vpack.c.b16 %v925, %v921
        %v1062 = vpack.c.b16 %v926, %v922
        %v1063 = vpack.c.b16 %v931, %v927
        %v1064 = vpack.c.b16 %v932, %v928
        %v1065 = vpack.c.b16 %v933, %v929
        %v1066 = vpack.c.b16 %v934, %v930
        %v1067 = vpack.c.b16 %v939, %v935
        %v1068 = vpack.c.b16 %v940, %v936
        %v1069 = vpack.c.b16 %v941, %v937
        %v1070 = vpack.c.b16 %v942, %v938
        %1199 = vmatprep.subr.bf16.mxu0 %v944
        %1200 = vmatpush1.bf16.msra.mxu0 %v943
        %1201 = vmatprep.subr.bf16.mxu0 %v948
        %1202 = vmatpush1.bf16.msra.mxu0 %v947
        %1203 = vmatprep.subr.bf16.mxu0 %v952
        %1204 = vmatpush1.bf16.msra.mxu0 %v951
        %1205 = vmatprep.subr.bf16.mxu0 %v956
        %1206 = vmatpush1.bf16.msra.mxu0 %v955
        %1207 = vmatprep.subr.bf16.mxu0 %v960
        %1208 = vmatpush1.bf16.msra.mxu0 %v959
        %1209 = vmatprep.subr.bf16.mxu0 %v964
        %1210 = vmatpush1.bf16.msra.mxu0 %v963
        %1211 = vmatprep.subr.bf16.mxu0 %v968
        %1212 = vmatpush1.bf16.msra.mxu0 %v967
        %1213 = vmatprep.subr.bf16.mxu0 %v972
        %1214 = vmatpush1.bf16.msra.mxu0 %v971
        %1215 = vmatprep.subr.bf16.mxu0 %v976
        %1216 = vmatpush1.bf16.msra.mxu0 %v975
        %1217 = vmatprep.subr.bf16.mxu0 %v980
        %1218 = vmatpush1.bf16.msra.mxu0 %v979
        %1219 = vmatprep.subr.bf16.mxu0 %v984
        %1220 = vmatpush1.bf16.msra.mxu0 %v983
        %1221 = vmatprep.subr.bf16.mxu0 %v988
        %1222 = vmatpush1.bf16.msra.mxu0 %v987
        %1223 = vmatprep.subr.bf16.mxu0 %v992
        %1224 = vmatpush1.bf16.msra.mxu0 %v991
        %1225 = vmatprep.subr.bf16.mxu0 %v996
        %1226 = vmatpush1.bf16.msra.mxu0 %v995
        %1227 = vmatprep.subr.bf16.mxu0 %v1000
        %1228 = vmatpush1.bf16.msra.mxu0 %v999
        %1229 = vmatprep.subr.bf16.mxu0 %v1004
        %1230 = vmatpush1.bf16.msra.mxu0 %v1003
        %1231 = vmatprep.mubr.bf16.mxu0 %v496
        %1232 = vmatmul.mubr.bf16.gmra.mrb[0].mxu0 %v495
        %v1233 = vpop.f32.mrb[0].mxu0
        %v1234 = vadd.f32 0.0, %v1233
        %v1235 = vpop.f32.mrb[0].mxu0
        %v1236 = vadd.f32 0.0, %v1235
        %v1237 = vpop.f32.mrb[0].mxu0
        %v1238 = vadd.f32 0.0, %v1237
        %v1239 = vpop.f32.mrb[0].mxu0
        %v1240 = vadd.f32 0.0, %v1239
        %1241 = vmatprep.mubr.bf16.mxu0 %v500
        %1242 = vmatmul.mubr.bf16.gmra.mrb[0].mxu0 %v499
        %v1243 = vpop.f32.mrb[0].mxu0
        %v1244 = vadd.f32 0.0, %v1243
        %v1245 = vpop.f32.mrb[0].mxu0
        %v1246 = vadd.f32 0.0, %v1245
        %v1247 = vpop.f32.mrb[0].mxu0
        %v1248 = vadd.f32 0.0, %v1247
        %v1249 = vpop.f32.mrb[0].mxu0
        %v1250 = vadd.f32 0.0, %v1249
        %1251 = vmatprep.mubr.bf16.mxu0 %v504
        %1252 = vmatmul.mubr.bf16.gmra.mrb[0].mxu0 %v503
        %v1253 = vpop.f32.mrb[0].mxu0
        %v1254 = vadd.f32 0.0, %v1253
        %v1255 = vpop.f32.mrb[0].mxu0
        %v1256 = vadd.f32 0.0, %v1255
        %v1257 = vpop.f32.mrb[0].mxu0
        %v1258 = vadd.f32 0.0, %v1257
        %v1259 = vpop.f32.mrb[0].mxu0
        %v1260 = vadd.f32 0.0, %v1259
        %1261 = vmatprep.mubr.bf16.mxu0 %v508
        %1262 = vmatmul.mubr.bf16.gmra.mrb[0].mxu0 %v507
        %v1263 = vpop.f32.mrb[0].mxu0
        %v1264 = vadd.f32 0.0, %v1263
        %v1265 = vpop.f32.mrb[0].mxu0
        %v1266 = vadd.f32 0.0, %v1265
        %v1267 = vpop.f32.mrb[0].mxu0
        %v1268 = vadd.f32 0.0, %v1267
        %v1269 = vpop.f32.mrb[0].mxu0
        %v1270 = vadd.f32 0.0, %v1269
        %1271 = vmatprep.mubr.bf16.mxu0 %v512
        %1272 = vmatmul.mubr.bf16.gmra.mrb[0].mxu0 %v511
        %v1273 = vpop.f32.mrb[0].mxu0
        %v1274 = vadd.f32 0.0, %v1273
        %v1275 = vpop.f32.mrb[0].mxu0
        %v1276 = vadd.f32 0.0, %v1275
        %v1277 = vpop.f32.mrb[0].mxu0
        %v1278 = vadd.f32 0.0, %v1277
        %v1279 = vpop.f32.mrb[0].mxu0
        %v1280 = vadd.f32 0.0, %v1279
        %1281 = vmatprep.mubr.bf16.mxu0 %v516
        %1282 = vmatmul.mubr.bf16.gmra.mrb[0].mxu0 %v515
        %v1283 = vpop.f32.mrb[0].mxu0
        %v1284 = vadd.f32 0.0, %v1283
        %v1285 = vpop.f32.mrb[0].mxu0
        %v1286 = vadd.f32 0.0, %v1285
        %v1287 = vpop.f32.mrb[0].mxu0
        %v1288 = vadd.f32 0.0, %v1287
        %v1289 = vpop.f32.mrb[0].mxu0
        %v1290 = vadd.f32 0.0, %v1289
        %1291 = vmatprep.mubr.bf16.mxu0 %v520
        %1292 = vmatmul.mubr.bf16.gmra.mrb[0].mxu0 %v519
        %v1293 = vpop.f32.mrb[0].mxu0
        %v1294 = vadd.f32 0.0, %v1293
        %v1295 = vpop.f32.mrb[0].mxu0
        %v1296 = vadd.f32 0.0, %v1295
        %v1297 = vpop.f32.mrb[0].mxu0
        %v1298 = vadd.f32 0.0, %v1297
        %v1299 = vpop.f32.mrb[0].mxu0
        %v1300 = vadd.f32 0.0, %v1299
        %1301 = vmatprep.mubr.bf16.mxu0 %v524
        %1302 = vmatmul.mubr.bf16.gmra.mrb[0].mxu0 %v523
        %v1303 = vpop.f32.mrb[0].mxu0
        %v1304 = vadd.f32 0.0, %v1303
        %v1305 = vpop.f32.mrb[0].mxu0
        %v1306 = vadd.f32 0.0, %v1305
        %v1307 = vpop.f32.mrb[0].mxu0
        %v1308 = vadd.f32 0.0, %v1307
        %v1309 = vpop.f32.mrb[0].mxu0
        %v1310 = vadd.f32 0.0, %v1309
        %1311 = vdwg.mxu0
        %1312 = vmatprep.subr.bf16.mxu0 %v1008
        %1313 = vmatpush1.bf16.msra.mxu0 %v1007
        %1314 = vmatprep.subr.bf16.mxu0 %v1012
        %1315 = vmatpush1.bf16.msra.mxu0 %v1011
        %1316 = vmatprep.subr.bf16.mxu0 %v1016
        %1317 = vmatpush1.bf16.msra.mxu0 %v1015
        %1318 = vmatprep.subr.bf16.mxu0 %v1020
        %1319 = vmatpush1.bf16.msra.mxu0 %v1019
        %1320 = vmatprep.subr.bf16.mxu0 %v1024
        %1321 = vmatpush1.bf16.msra.mxu0 %v1023
        %1322 = vmatprep.subr.bf16.mxu0 %v1028
        %1323 = vmatpush1.bf16.msra.mxu0 %v1027
        %1324 = vmatprep.subr.bf16.mxu0 %v1032
        %1325 = vmatpush1.bf16.msra.mxu0 %v1031
        %1326 = vmatprep.subr.bf16.mxu0 %v1036
        %1327 = vmatpush1.bf16.msra.mxu0 %v1035
        %1328 = vmatprep.subr.bf16.mxu0 %v1040
        %1329 = vmatpush1.bf16.msra.mxu0 %v1039
        %1330 = vmatprep.subr.bf16.mxu0 %v1044
        %1331 = vmatpush1.bf16.msra.mxu0 %v1043
        %1332 = vmatprep.subr.bf16.mxu0 %v1048
        %1333 = vmatpush1.bf16.msra.mxu0 %v1047
        %1334 = vmatprep.subr.bf16.mxu0 %v1052
        %1335 = vmatpush1.bf16.msra.mxu0 %v1051
        %1336 = vmatprep.subr.bf16.mxu0 %v1056
        %1337 = vmatpush1.bf16.msra.mxu0 %v1055
        %1338 = vmatprep.subr.bf16.mxu0 %v1060
        %1339 = vmatpush1.bf16.msra.mxu0 %v1059
        %1340 = vmatprep.subr.bf16.mxu0 %v1064
        %1341 = vmatpush1.bf16.msra.mxu0 %v1063
        %1342 = vmatprep.subr.bf16.mxu0 %v1068
        %1343 = vmatpush1.bf16.msra.mxu0 %v1067
        %1344 = vmatprep.mubr.bf16.mxu0 %v498
        %1345 = vmatmul.mubr.bf16.gmra.mrb[0].mxu0 %v497
        %v1346 = vpop.f32.mrb[0].mxu0
        %v1347 = vadd.f32 %v1234, %v1346
        %v1348 = vpop.f32.mrb[0].mxu0
        %v1349 = vadd.f32 %v1236, %v1348
        %v1350 = vpop.f32.mrb[0].mxu0
        %v1351 = vadd.f32 %v1238, %v1350
        %v1352 = vpop.f32.mrb[0].mxu0
        %v1353 = vadd.f32 %v1240, %v1352
        %1354 = vmatprep.mubr.bf16.mxu0 %v502
        %1355 = vmatmul.mubr.bf16.gmra.mrb[0].mxu0 %v501
        %v1356 = vpop.f32.mrb[0].mxu0
        %v1357 = vadd.f32 %v1244, %v1356
        %v1358 = vpop.f32.mrb[0].mxu0
        %v1359 = vadd.f32 %v1246, %v1358
        %v1360 = vpop.f32.mrb[0].mxu0
        %v1361 = vadd.f32 %v1248, %v1360
        %v1362 = vpop.f32.mrb[0].mxu0
        %v1363 = vadd.f32 %v1250, %v1362
        %1364 = vmatprep.mubr.bf16.mxu0 %v506
        %1365 = vmatmul.mubr.bf16.gmra.mrb[0].mxu0 %v505
        %v1366 = vpop.f32.mrb[0].mxu0
        %v1367 = vadd.f32 %v1254, %v1366
        %v1368 = vpop.f32.mrb[0].mxu0
        %v1369 = vadd.f32 %v1256, %v1368
        %v1370 = vpop.f32.mrb[0].mxu0
        %v1371 = vadd.f32 %v1258, %v1370
        %v1372 = vpop.f32.mrb[0].mxu0
        %v1373 = vadd.f32 %v1260, %v1372
        %1374 = vmatprep.mubr.bf16.mxu0 %v510
        %1375 = vmatmul.mubr.bf16.gmra.mrb[0].mxu0 %v509
        %v1376 = vpop.f32.mrb[0].mxu0
        %v1377 = vadd.f32 %v1264, %v1376
        %v1378 = vpop.f32.mrb[0].mxu0
        %v1379 = vadd.f32 %v1266, %v1378
        %v1380 = vpop.f32.mrb[0].mxu0
        %v1381 = vadd.f32 %v1268, %v1380
        %v1382 = vpop.f32.mrb[0].mxu0
        %v1383 = vadd.f32 %v1270, %v1382
        %1384 = vmatprep.mubr.bf16.mxu0 %v514
        %1385 = vmatmul.mubr.bf16.gmra.mrb[0].mxu0 %v513
        %v1386 = vpop.f32.mrb[0].mxu0
        %v1387 = vadd.f32 %v1274, %v1386
        %v1388 = vpop.f32.mrb[0].mxu0
        %v1389 = vadd.f32 %v1276, %v1388
        %v1390 = vpop.f32.mrb[0].mxu0
        %v1391 = vadd.f32 %v1278, %v1390
        %v1392 = vpop.f32.mrb[0].mxu0
        %v1393 = vadd.f32 %v1280, %v1392
        %1394 = vmatprep.mubr.bf16.mxu0 %v518
        %1395 = vmatmul.mubr.bf16.gmra.mrb[0].mxu0 %v517
        %v1396 = vpop.f32.mrb[0].mxu0
        %v1397 = vadd.f32 %v1284, %v1396
        %v1398 = vpop.f32.mrb[0].mxu0
        %v1399 = vadd.f32 %v1286, %v1398
        %v1400 = vpop.f32.mrb[0].mxu0
        %v1401 = vadd.f32 %v1288, %v1400
        %v1402 = vpop.f32.mrb[0].mxu0
        %v1403 = vadd.f32 %v1290, %v1402
        %1404 = vmatprep.mubr.bf16.mxu0 %v522
        %1405 = vmatmul.mubr.bf16.gmra.mrb[0].mxu0 %v521
        %v1406 = vpop.f32.mrb[0].mxu0
        %v1407 = vadd.f32 %v1294, %v1406
        %v1408 = vpop.f32.mrb[0].mxu0
        %v1409 = vadd.f32 %v1296, %v1408
        %v1410 = vpop.f32.mrb[0].mxu0
        %v1411 = vadd.f32 %v1298, %v1410
        %v1412 = vpop.f32.mrb[0].mxu0
        %v1413 = vadd.f32 %v1300, %v1412
        %1414 = vmatprep.mubr.bf16.mxu0 %v526
        %1415 = vmatmul.mubr.bf16.gmra.mrb[0].mxu0 %v525
        %v1416 = vpop.f32.mrb[0].mxu0
        %v1417 = vadd.f32 %v1304, %v1416
        %v1418 = vpop.f32.mrb[0].mxu0
        %v1419 = vadd.f32 %v1306, %v1418
        %v1420 = vpop.f32.mrb[0].mxu0
        %v1421 = vadd.f32 %v1308, %v1420
        %v1422 = vpop.f32.mrb[0].mxu0
        %v1423 = vadd.f32 %v1310, %v1422
        %1424 = vdwg.mxu0
        %1425 = vmatprep.subr.bf16.mxu0 %v946
        %1426 = vmatpush1.bf16.msra.mxu0 %v945
        %1427 = vmatprep.subr.bf16.mxu0 %v950
        %1428 = vmatpush1.bf16.msra.mxu0 %v949
        %1429 = vmatprep.subr.bf16.mxu0 %v954
        %1430 = vmatpush1.bf16.msra.mxu0 %v953
        %1431 = vmatprep.subr.bf16.mxu0 %v958
        %1432 = vmatpush1.bf16.msra.mxu0 %v957
        %1433 = vmatprep.subr.bf16.mxu0 %v962
        %1434 = vmatpush1.bf16.msra.mxu0 %v961
        %1435 = vmatprep.subr.bf16.mxu0 %v966
        %1436 = vmatpush1.bf16.msra.mxu0 %v965
        %1437 = vmatprep.subr.bf16.mxu0 %v970
        %1438 = vmatpush1.bf16.msra.mxu0 %v969
        %1439 = vmatprep.subr.bf16.mxu0 %v974
        %1440 = vmatpush1.bf16.msra.mxu0 %v973
        %1441 = vmatprep.subr.bf16.mxu0 %v978
        %1442 = vmatpush1.bf16.msra.mxu0 %v977
        %1443 = vmatprep.subr.bf16.mxu0 %v982
        %1444 = vmatpush1.bf16.msra.mxu0 %v981
        %1445 = vmatprep.subr.bf16.mxu0 %v986
        %1446 = vmatpush1.bf16.msra.mxu0 %v985
        %1447 = vmatprep.subr.bf16.mxu0 %v990
        %1448 = vmatpush1.bf16.msra.mxu0 %v989
        %1449 = vmatprep.subr.bf16.mxu0 %v994
        %1450 = vmatpush1.bf16.msra.mxu0 %v993
        %1451 = vmatprep.subr.bf16.mxu0 %v998
        %1452 = vmatpush1.bf16.msra.mxu0 %v997
        %1453 = vmatprep.subr.bf16.mxu0 %v1002
        %1454 = vmatpush1.bf16.msra.mxu0 %v1001
        %1455 = vmatprep.subr.bf16.mxu0 %v1006
        %1456 = vmatpush1.bf16.msra.mxu0 %v1005
        %1457 = vmatprep.mubr.bf16.mxu0 %v496
        %1458 = vmatmul.mubr.bf16.gmra.mrb[0].mxu0 %v495
        %v1459 = vpop.f32.mrb[0].mxu0
        %v1460 = vadd.f32 0.0, %v1459
        %v1461 = vpop.f32.mrb[0].mxu0
        %v1462 = vadd.f32 0.0, %v1461
        %v1463 = vpop.f32.mrb[0].mxu0
        %v1464 = vadd.f32 0.0, %v1463
        %v1465 = vpop.f32.mrb[0].mxu0
        %v1466 = vadd.f32 0.0, %v1465
        %1467 = vmatprep.mubr.bf16.mxu0 %v500
        %1468 = vmatmul.mubr.bf16.gmra.mrb[0].mxu0 %v499
        %v1469 = vpop.f32.mrb[0].mxu0
        %v1470 = vadd.f32 0.0, %v1469
        %v1471 = vpop.f32.mrb[0].mxu0
        %v1472 = vadd.f32 0.0, %v1471
        %v1473 = vpop.f32.mrb[0].mxu0
        %v1474 = vadd.f32 0.0, %v1473
        %v1475 = vpop.f32.mrb[0].mxu0
        %v1476 = vadd.f32 0.0, %v1475
        %1477 = vmatprep.mubr.bf16.mxu0 %v504
        %1478 = vmatmul.mubr.bf16.gmra.mrb[0].mxu0 %v503
        %v1479 = vpop.f32.mrb[0].mxu0
        %v1480 = vadd.f32 0.0, %v1479
        %v1481 = vpop.f32.mrb[0].mxu0
        %v1482 = vadd.f32 0.0, %v1481
        %v1483 = vpop.f32.mrb[0].mxu0
        %v1484 = vadd.f32 0.0, %v1483
        %v1485 = vpop.f32.mrb[0].mxu0
        %v1486 = vadd.f32 0.0, %v1485
        %1487 = vmatprep.mubr.bf16.mxu0 %v508
        %1488 = vmatmul.mubr.bf16.gmra.mrb[0].mxu0 %v507
        %v1489 = vpop.f32.mrb[0].mxu0
        %v1490 = vadd.f32 0.0, %v1489
        %v1491 = vpop.f32.mrb[0].mxu0
        %v1492 = vadd.f32 0.0, %v1491
        %v1493 = vpop.f32.mrb[0].mxu0
        %v1494 = vadd.f32 0.0, %v1493
        %v1495 = vpop.f32.mrb[0].mxu0
        %v1496 = vadd.f32 0.0, %v1495
        %1497 = vmatprep.mubr.bf16.mxu0 %v512
        %1498 = vmatmul.mubr.bf16.gmra.mrb[0].mxu0 %v511
        %v1499 = vpop.f32.mrb[0].mxu0
        %v1500 = vadd.f32 0.0, %v1499
        %v1501 = vpop.f32.mrb[0].mxu0
        %v1502 = vadd.f32 0.0, %v1501
        %v1503 = vpop.f32.mrb[0].mxu0
        %v1504 = vadd.f32 0.0, %v1503
        %v1505 = vpop.f32.mrb[0].mxu0
        %v1506 = vadd.f32 0.0, %v1505
        %1507 = vmatprep.mubr.bf16.mxu0 %v516
        %1508 = vmatmul.mubr.bf16.gmra.mrb[0].mxu0 %v515
        %v1509 = vpop.f32.mrb[0].mxu0
        %v1510 = vadd.f32 0.0, %v1509
        %v1511 = vpop.f32.mrb[0].mxu0
        %v1512 = vadd.f32 0.0, %v1511
        %v1513 = vpop.f32.mrb[0].mxu0
        %v1514 = vadd.f32 0.0, %v1513
        %v1515 = vpop.f32.mrb[0].mxu0
        %v1516 = vadd.f32 0.0, %v1515
        %1517 = vmatprep.mubr.bf16.mxu0 %v520
        %1518 = vmatmul.mubr.bf16.gmra.mrb[0].mxu0 %v519
        %v1519 = vpop.f32.mrb[0].mxu0
        %v1520 = vadd.f32 0.0, %v1519
        %v1521 = vpop.f32.mrb[0].mxu0
        %v1522 = vadd.f32 0.0, %v1521
        %v1523 = vpop.f32.mrb[0].mxu0
        %v1524 = vadd.f32 0.0, %v1523
        %v1525 = vpop.f32.mrb[0].mxu0
        %v1526 = vadd.f32 0.0, %v1525
        %1527 = vmatprep.mubr.bf16.mxu0 %v524
        %1528 = vmatmul.mubr.bf16.gmra.mrb[0].mxu0 %v523
        %v1529 = vpop.f32.mrb[0].mxu0
        %v1530 = vadd.f32 0.0, %v1529
        %v1531 = vpop.f32.mrb[0].mxu0
        %v1532 = vadd.f32 0.0, %v1531
        %v1533 = vpop.f32.mrb[0].mxu0
        %v1534 = vadd.f32 0.0, %v1533
        %v1535 = vpop.f32.mrb[0].mxu0
        %v1536 = vadd.f32 0.0, %v1535
        %1537 = vdwg.mxu0
        %1538 = vmatprep.subr.bf16.mxu0 %v1010
        %1539 = vmatpush1.bf16.msra.mxu0 %v1009
        %1540 = vmatprep.subr.bf16.mxu0 %v1014
        %1541 = vmatpush1.bf16.msra.mxu0 %v1013
        %1542 = vmatprep.subr.bf16.mxu0 %v1018
        %1543 = vmatpush1.bf16.msra.mxu0 %v1017
        %1544 = vmatprep.subr.bf16.mxu0 %v1022
        %1545 = vmatpush1.bf16.msra.mxu0 %v1021
        %1546 = vmatprep.subr.bf16.mxu0 %v1026
        %1547 = vmatpush1.bf16.msra.mxu0 %v1025
        %1548 = vmatprep.subr.bf16.mxu0 %v1030
        %1549 = vmatpush1.bf16.msra.mxu0 %v1029
        %1550 = vmatprep.subr.bf16.mxu0 %v1034
        %1551 = vmatpush1.bf16.msra.mxu0 %v1033
        %1552 = vmatprep.subr.bf16.mxu0 %v1038
        %1553 = vmatpush1.bf16.msra.mxu0 %v1037
        %1554 = vmatprep.subr.bf16.mxu0 %v1042
        %1555 = vmatpush1.bf16.msra.mxu0 %v1041
        %1556 = vmatprep.subr.bf16.mxu0 %v1046
        %1557 = vmatpush1.bf16.msra.mxu0 %v1045
        %1558 = vmatprep.subr.bf16.mxu0 %v1050
        %1559 = vmatpush1.bf16.msra.mxu0 %v1049
        %1560 = vmatprep.subr.bf16.mxu0 %v1054
        %1561 = vmatpush1.bf16.msra.mxu0 %v1053
        %1562 = vmatprep.subr.bf16.mxu0 %v1058
        %1563 = vmatpush1.bf16.msra.mxu0 %v1057
        %1564 = vmatprep.subr.bf16.mxu0 %v1062
        %1565 = vmatpush1.bf16.msra.mxu0 %v1061
        %1566 = vmatprep.subr.bf16.mxu0 %v1066
        %1567 = vmatpush1.bf16.msra.mxu0 %v1065
        %1568 = vmatprep.subr.bf16.mxu0 %v1070
        %1569 = vmatpush1.bf16.msra.mxu0 %v1069
        %1570 = vmatprep.mubr.bf16.mxu0 %v498
        %1571 = vmatmul.mubr.bf16.gmra.mrb[0].mxu0 %v497
        %v1572 = vpop.f32.mrb[0].mxu0
        %v1573 = vadd.f32 %v1460, %v1572
        %v1574 = vpop.f32.mrb[0].mxu0
        %v1575 = vadd.f32 %v1462, %v1574
        %v1576 = vpop.f32.mrb[0].mxu0
        %v1577 = vadd.f32 %v1464, %v1576
        %v1578 = vpop.f32.mrb[0].mxu0
        %v1579 = vadd.f32 %v1466, %v1578
        %1580 = vmatprep.mubr.bf16.mxu0 %v502
        %1581 = vmatmul.mubr.bf16.gmra.mrb[0].mxu0 %v501
        %v1582 = vpop.f32.mrb[0].mxu0
        %v1583 = vadd.f32 %v1470, %v1582
        %v1584 = vpop.f32.mrb[0].mxu0
        %v1585 = vadd.f32 %v1472, %v1584
        %v1586 = vpop.f32.mrb[0].mxu0
        %v1587 = vadd.f32 %v1474, %v1586
        %v1588 = vpop.f32.mrb[0].mxu0
        %v1589 = vadd.f32 %v1476, %v1588
        %1590 = vmatprep.mubr.bf16.mxu0 %v506
        %1591 = vmatmul.mubr.bf16.gmra.mrb[0].mxu0 %v505
        %v1592 = vpop.f32.mrb[0].mxu0
        %v1593 = vadd.f32 %v1480, %v1592
        %v1594 = vpop.f32.mrb[0].mxu0
        %v1595 = vadd.f32 %v1482, %v1594
        %v1596 = vpop.f32.mrb[0].mxu0
        %v1597 = vadd.f32 %v1484, %v1596
        %v1598 = vpop.f32.mrb[0].mxu0
        %v1599 = vadd.f32 %v1486, %v1598
        %1600 = vmatprep.mubr.bf16.mxu0 %v510
        %1601 = vmatmul.mubr.bf16.gmra.mrb[0].mxu0 %v509
        %v1602 = vpop.f32.mrb[0].mxu0
        %v1603 = vadd.f32 %v1490, %v1602
        %v1604 = vpop.f32.mrb[0].mxu0
        %v1605 = vadd.f32 %v1492, %v1604
        %v1606 = vpop.f32.mrb[0].mxu0
        %v1607 = vadd.f32 %v1494, %v1606
        %v1608 = vpop.f32.mrb[0].mxu0
        %v1609 = vadd.f32 %v1496, %v1608
        %1610 = vmatprep.mubr.bf16.mxu0 %v514
        %1611 = vmatmul.mubr.bf16.gmra.mrb[0].mxu0 %v513
        %v1612 = vpop.f32.mrb[0].mxu0
        %v1613 = vadd.f32 %v1500, %v1612
        %v1614 = vpop.f32.mrb[0].mxu0
        %v1615 = vadd.f32 %v1502, %v1614
        %v1616 = vpop.f32.mrb[0].mxu0
        %v1617 = vadd.f32 %v1504, %v1616
        %v1618 = vpop.f32.mrb[0].mxu0
        %v1619 = vadd.f32 %v1506, %v1618
        %1620 = vmatprep.mubr.bf16.mxu0 %v518
        %1621 = vmatmul.mubr.bf16.gmra.mrb[0].mxu0 %v517
        %v1622 = vpop.f32.mrb[0].mxu0
        %v1623 = vadd.f32 %v1510, %v1622
        %v1624 = vpop.f32.mrb[0].mxu0
        %v1625 = vadd.f32 %v1512, %v1624
        %v1626 = vpop.f32.mrb[0].mxu0
        %v1627 = vadd.f32 %v1514, %v1626
        %v1628 = vpop.f32.mrb[0].mxu0
        %v1629 = vadd.f32 %v1516, %v1628
        %1630 = vmatprep.mubr.bf16.mxu0 %v522
        %1631 = vmatmul.mubr.bf16.gmra.mrb[0].mxu0 %v521
        %v1632 = vpop.f32.mrb[0].mxu0
        %v1633 = vadd.f32 %v1520, %v1632
        %v1634 = vpop.f32.mrb[0].mxu0
        %v1635 = vadd.f32 %v1522, %v1634
        %v1636 = vpop.f32.mrb[0].mxu0
        %v1637 = vadd.f32 %v1524, %v1636
        %v1638 = vpop.f32.mrb[0].mxu0
        %v1639 = vadd.f32 %v1526, %v1638
        %1640 = vmatprep.mubr.bf16.mxu0 %v526
        %1641 = vmatmul.mubr.bf16.gmra.mrb[0].mxu0 %v525
        %v1642 = vpop.f32.mrb[0].mxu0
        %v1643 = vadd.f32 %v1530, %v1642
        %v1644 = vpop.f32.mrb[0].mxu0
        %v1645 = vadd.f32 %v1532, %v1644
        %v1646 = vpop.f32.mrb[0].mxu0
        %v1647 = vadd.f32 %v1534, %v1646
        %v1648 = vpop.f32.mrb[0].mxu0
        %v1649 = vadd.f32 %v1536, %v1648
        %1650 = vdwg.mxu0
        %v1651 = vmul.f32 %v1347, %v1347
        %v1652 = vmul.f32 %v1349, %v1349
        %v1653 = vmul.f32 %v1573, %v1573
        %v1654 = vmul.f32 %v1575, %v1575
        %v1655 = vmul.f32 %v1351, %v1351
        %v1656 = vmul.f32 %v1353, %v1353
        %v1657 = vmul.f32 %v1577, %v1577
        %v1658 = vmul.f32 %v1579, %v1579
        %v1659 = vmul.f32 %v1357, %v1357
        %v1660 = vmul.f32 %v1359, %v1359
        %v1661 = vmul.f32 %v1583, %v1583
        %v1662 = vmul.f32 %v1585, %v1585
        %v1663 = vmul.f32 %v1361, %v1361
        %v1664 = vmul.f32 %v1363, %v1363
        %v1665 = vmul.f32 %v1587, %v1587
        %v1666 = vmul.f32 %v1589, %v1589
        %v1667 = vmul.f32 %v1367, %v1367
        %v1668 = vmul.f32 %v1369, %v1369
        %v1669 = vmul.f32 %v1593, %v1593
        %v1670 = vmul.f32 %v1595, %v1595
        %v1671 = vmul.f32 %v1371, %v1371
        %v1672 = vmul.f32 %v1373, %v1373
        %v1673 = vmul.f32 %v1597, %v1597
        %v1674 = vmul.f32 %v1599, %v1599
        %v1675 = vmul.f32 %v1377, %v1377
        %v1676 = vmul.f32 %v1379, %v1379
        %v1677 = vmul.f32 %v1603, %v1603
        %v1678 = vmul.f32 %v1605, %v1605
        %v1679 = vmul.f32 %v1381, %v1381
        %v1680 = vmul.f32 %v1383, %v1383
        %v1681 = vmul.f32 %v1607, %v1607
        %v1682 = vmul.f32 %v1609, %v1609
        %v1683 = vmul.f32 %v1387, %v1387
        %v1684 = vmul.f32 %v1389, %v1389
        %v1685 = vmul.f32 %v1613, %v1613
        %v1686 = vmul.f32 %v1615, %v1615
        %v1687 = vmul.f32 %v1391, %v1391
        %v1688 = vmul.f32 %v1393, %v1393
        %v1689 = vmul.f32 %v1617, %v1617
        %v1690 = vmul.f32 %v1619, %v1619
        %v1691 = vmul.f32 %v1397, %v1397
        %v1692 = vmul.f32 %v1399, %v1399
        %v1693 = vmul.f32 %v1623, %v1623
        %v1694 = vmul.f32 %v1625, %v1625
        %v1695 = vmul.f32 %v1401, %v1401
        %v1696 = vmul.f32 %v1403, %v1403
        %v1697 = vmul.f32 %v1627, %v1627
        %v1698 = vmul.f32 %v1629, %v1629
        %v1699 = vmul.f32 %v1407, %v1407
        %v1700 = vmul.f32 %v1409, %v1409
        %v1701 = vmul.f32 %v1633, %v1633
        %v1702 = vmul.f32 %v1635, %v1635
        %v1703 = vmul.f32 %v1411, %v1411
        %v1704 = vmul.f32 %v1413, %v1413
        %v1705 = vmul.f32 %v1637, %v1637
        %v1706 = vmul.f32 %v1639, %v1639
        %v1707 = vmul.f32 %v1417, %v1417
        %v1708 = vmul.f32 %v1419, %v1419
        %v1709 = vmul.f32 %v1643, %v1643
        %v1710 = vmul.f32 %v1645, %v1645
        %v1711 = vmul.f32 %v1421, %v1421
        %v1712 = vmul.f32 %v1423, %v1423
        %v1713 = vmul.f32 %v1647, %v1647
        %v1714 = vmul.f32 %v1649, %v1649
        %v1715 = vpack.c.bf16 %v1655, %v1651
        %v1716 = vpack.c.bf16 %v1656, %v1652
        %v1717 = vpack.c.bf16 %v1657, %v1653
        %v1718 = vpack.c.bf16 %v1658, %v1654
        %v1719 = vpack.c.bf16 %v1663, %v1659
        %v1720 = vpack.c.bf16 %v1664, %v1660
        %v1721 = vpack.c.bf16 %v1665, %v1661
        %v1722 = vpack.c.bf16 %v1666, %v1662
        %v1723 = vpack.c.bf16 %v1671, %v1667
        %v1724 = vpack.c.bf16 %v1672, %v1668
        %v1725 = vpack.c.bf16 %v1673, %v1669
        %v1726 = vpack.c.bf16 %v1674, %v1670
        %v1727 = vpack.c.bf16 %v1679, %v1675
        %v1728 = vpack.c.bf16 %v1680, %v1676
        %v1729 = vpack.c.bf16 %v1681, %v1677
        %v1730 = vpack.c.bf16 %v1682, %v1678
        %v1731 = vpack.c.bf16 %v1687, %v1683
        %v1732 = vpack.c.bf16 %v1688, %v1684
        %v1733 = vpack.c.bf16 %v1689, %v1685
        %v1734 = vpack.c.bf16 %v1690, %v1686
        %v1735 = vpack.c.bf16 %v1695, %v1691
        %v1736 = vpack.c.bf16 %v1696, %v1692
        %v1737 = vpack.c.bf16 %v1697, %v1693
        %v1738 = vpack.c.bf16 %v1698, %v1694
        %v1739 = vpack.c.bf16 %v1703, %v1699
        %v1740 = vpack.c.bf16 %v1704, %v1700
        %v1741 = vpack.c.bf16 %v1705, %v1701
        %v1742 = vpack.c.bf16 %v1706, %v1702
        %v1743 = vpack.c.bf16 %v1711, %v1707
        %v1744 = vpack.c.bf16 %v1712, %v1708
        %v1745 = vpack.c.bf16 %v1713, %v1709
        %v1746 = vpack.c.bf16 %v1714, %v1710
        %v1747 = vld [vmem:[#allocation7] sm:$0xf]
        %v1748 = vld [vmem:[#allocation7 + $0x4] sm:$0xf]
        %v1749 = vld [vmem:[#allocation7 + $0x8] sm:$0xf]
        %v1750 = vld [vmem:[#allocation7 + $0xc] sm:$0xf]
        %v1751 = vld [vmem:[#allocation7 + $0x10] sm:$0xf]
        %v1752 = vld [vmem:[#allocation7 + $0x14] sm:$0xf]
        %v1753 = vld [vmem:[#allocation7 + $0x18] sm:$0xf]
        %v1754 = vld [vmem:[#allocation7 + $0x1c] sm:$0xf]
        %v1755 = vld [vmem:[#allocation7 + $0x20] sm:$0xf]
        %v1756 = vld [vmem:[#allocation7 + $0x24] sm:$0xf]
        %v1757 = vld [vmem:[#allocation7 + $0x28] sm:$0xf]
        %v1758 = vld [vmem:[#allocation7 + $0x2c] sm:$0xf]
        %v1759 = vld [vmem:[#allocation7 + $0x30] sm:$0xf]
        %v1760 = vld [vmem:[#allocation7 + $0x34] sm:$0xf]
        %v1761 = vld [vmem:[#allocation7 + $0x38] sm:$0xf]
        %v1762 = vld [vmem:[#allocation7 + $0x3c] sm:$0xf]
        %v1763 = vld [vmem:[#allocation7 + $0x40] sm:$0xf]
        %v1764 = vld [vmem:[#allocation7 + $0x44] sm:$0xf]
        %v1765 = vld [vmem:[#allocation7 + $0x48] sm:$0xf]
        %v1766 = vld [vmem:[#allocation7 + $0x4c] sm:$0xf]
        %v1767 = vld [vmem:[#allocation7 + $0x50] sm:$0xf]
        %v1768 = vld [vmem:[#allocation7 + $0x54] sm:$0xf]
        %v1769 = vld [vmem:[#allocation7 + $0x58] sm:$0xf]
        %v1770 = vld [vmem:[#allocation7 + $0x5c] sm:$0xf]
        %v1771 = vld [vmem:[#allocation7 + $0x60] sm:$0xf]
        %v1772 = vld [vmem:[#allocation7 + $0x64] sm:$0xf]
        %v1773 = vld [vmem:[#allocation7 + $0x68] sm:$0xf]
        %v1774 = vld [vmem:[#allocation7 + $0x6c] sm:$0xf]
        %v1775 = vld [vmem:[#allocation7 + $0x70] sm:$0xf]
        %v1776 = vld [vmem:[#allocation7 + $0x74] sm:$0xf]
        %v1777 = vld [vmem:[#allocation7 + $0x78] sm:$0xf]
        %v1778 = vld [vmem:[#allocation7 + $0x7c] sm:$0xf]
        %v1779 = vld [vmem:[#allocation7 + $0x80] sm:$0xf]
        %v1780 = vld [vmem:[#allocation7 + $0x84] sm:$0xf]
        %v1781 = vld [vmem:[#allocation7 + $0x88] sm:$0xf]
        %v1782 = vld [vmem:[#allocation7 + $0x8c] sm:$0xf]
        %v1783 = vld [vmem:[#allocation7 + $0x90] sm:$0xf]
        %v1784 = vld [vmem:[#allocation7 + $0x94] sm:$0xf]
        %v1785 = vld [vmem:[#allocation7 + $0x98] sm:$0xf]
        %v1786 = vld [vmem:[#allocation7 + $0x9c] sm:$0xf]
        %v1787 = vld [vmem:[#allocation7 + $0xa0] sm:$0xf]
        %v1788 = vld [vmem:[#allocation7 + $0xa4] sm:$0xf]
        %v1789 = vld [vmem:[#allocation7 + $0xa8] sm:$0xf]
        %v1790 = vld [vmem:[#allocation7 + $0xac] sm:$0xf]
        %v1791 = vld [vmem:[#allocation7 + $0xb0] sm:$0xf]
        %v1792 = vld [vmem:[#allocation7 + $0xb4] sm:$0xf]
        %v1793 = vld [vmem:[#allocation7 + $0xb8] sm:$0xf]
        %v1794 = vld [vmem:[#allocation7 + $0xbc] sm:$0xf]
        %v1795 = vld [vmem:[#allocation7 + $0xc0] sm:$0xf]
        %v1796 = vld [vmem:[#allocation7 + $0xc4] sm:$0xf]
        %v1797 = vld [vmem:[#allocation7 + $0xc8] sm:$0xf]
        %v1798 = vld [vmem:[#allocation7 + $0xcc] sm:$0xf]
        %v1799 = vld [vmem:[#allocation7 + $0xd0] sm:$0xf]
        %v1800 = vld [vmem:[#allocation7 + $0xd4] sm:$0xf]
        %v1801 = vld [vmem:[#allocation7 + $0xd8] sm:$0xf]
        %v1802 = vld [vmem:[#allocation7 + $0xdc] sm:$0xf]
        %v1803 = vld [vmem:[#allocation7 + $0xe0] sm:$0xf]
        %v1804 = vld [vmem:[#allocation7 + $0xe4] sm:$0xf]
        %v1805 = vld [vmem:[#allocation7 + $0xe8] sm:$0xf]
        %v1806 = vld [vmem:[#allocation7 + $0xec] sm:$0xf]
        %v1807 = vld [vmem:[#allocation7 + $0xf0] sm:$0xf]
        %v1808 = vld [vmem:[#allocation7 + $0xf4] sm:$0xf]
        %v1809 = vld [vmem:[#allocation7 + $0xf8] sm:$0xf]
        %v1810 = vld [vmem:[#allocation7 + $0xfc] sm:$0xf]
        %v1875 = vunpack.c.l.b16 %v1747
        %v1876 = vunpack.c.l.b16 %v1748
        %v1877 = vunpack.c.l.b16 %v1749
        %v1878 = vunpack.c.l.b16 %v1750
        %v1879 = vunpack.c.l.b16 %v1751
        %v1880 = vunpack.c.l.b16 %v1752
        %v1881 = vunpack.c.l.b16 %v1753
        %v1882 = vunpack.c.l.b16 %v1754
        %v1883 = vunpack.c.l.b16 %v1755
        %v1884 = vunpack.c.l.b16 %v1756
        %v1885 = vunpack.c.l.b16 %v1757
        %v1886 = vunpack.c.l.b16 %v1758
        %v1887 = vunpack.c.l.b16 %v1759
        %v1888 = vunpack.c.l.b16 %v1760
        %v1889 = vunpack.c.l.b16 %v1761
        %v1890 = vunpack.c.l.b16 %v1762
        %v1891 = vunpack.c.l.b16 %v1763
        %v1892 = vunpack.c.l.b16 %v1764
        %v1893 = vunpack.c.l.b16 %v1765
        %v1894 = vunpack.c.l.b16 %v1766
        %v1895 = vunpack.c.l.b16 %v1767
        %v1896 = vunpack.c.l.b16 %v1768
        %v1897 = vunpack.c.l.b16 %v1769
        %v1898 = vunpack.c.l.b16 %v1770
        %v1899 = vunpack.c.l.b16 %v1771
        %v1900 = vunpack.c.l.b16 %v1772
        %v1901 = vunpack.c.l.b16 %v1773
        %v1902 = vunpack.c.l.b16 %v1774
        %v1903 = vunpack.c.l.b16 %v1775
        %v1904 = vunpack.c.l.b16 %v1776
        %v1905 = vunpack.c.l.b16 %v1777
        %v1906 = vunpack.c.l.b16 %v1778
        %v1907 = vunpack.c.l.b16 %v1779
        %v1908 = vunpack.c.l.b16 %v1780
        %v1909 = vunpack.c.l.b16 %v1781
        %v1910 = vunpack.c.l.b16 %v1782
        %v1911 = vunpack.c.l.b16 %v1783
        %v1912 = vunpack.c.l.b16 %v1784
        %v1913 = vunpack.c.l.b16 %v1785
        %v1914 = vunpack.c.l.b16 %v1786
        %v1915 = vunpack.c.l.b16 %v1787
        %v1916 = vunpack.c.l.b16 %v1788
        %v1917 = vunpack.c.l.b16 %v1789
        %v1918 = vunpack.c.l.b16 %v1790
        %v1919 = vunpack.c.l.b16 %v1791
        %v1920 = vunpack.c.l.b16 %v1792
        %v1921 = vunpack.c.l.b16 %v1793
        %v1922 = vunpack.c.l.b16 %v1794
        %v1923 = vunpack.c.l.b16 %v1795
        %v1924 = vunpack.c.l.b16 %v1796
        %v1925 = vunpack.c.l.b16 %v1797
        %v1926 = vunpack.c.l.b16 %v1798
        %v1927 = vunpack.c.l.b16 %v1799
        %v1928 = vunpack.c.l.b16 %v1800
        %v1929 = vunpack.c.l.b16 %v1801
        %v1930 = vunpack.c.l.b16 %v1802
        %v1931 = vunpack.c.l.b16 %v1803
        %v1932 = vunpack.c.l.b16 %v1804
        %v1933 = vunpack.c.l.b16 %v1805
        %v1934 = vunpack.c.l.b16 %v1806
        %v1935 = vunpack.c.l.b16 %v1807
        %v1936 = vunpack.c.l.b16 %v1808
        %v1937 = vunpack.c.l.b16 %v1809
        %v1938 = vunpack.c.l.b16 %v1810
        %v1939 = vpack.c.b16 %v1876, %v1875
        %v1940 = vpack.c.b16 %v1878, %v1877
        %v1941 = vpack.c.b16 %v1880, %v1879
        %v1942 = vpack.c.b16 %v1882, %v1881
        %v1943 = vpack.c.b16 %v1884, %v1883
        %v1944 = vpack.c.b16 %v1886, %v1885
        %v1945 = vpack.c.b16 %v1888, %v1887
        %v1946 = vpack.c.b16 %v1890, %v1889
        %v1947 = vpack.c.b16 %v1892, %v1891
        %v1948 = vpack.c.b16 %v1894, %v1893
        %v1949 = vpack.c.b16 %v1896, %v1895
        %v1950 = vpack.c.b16 %v1898, %v1897
        %v1951 = vpack.c.b16 %v1900, %v1899
        %v1952 = vpack.c.b16 %v1902, %v1901
        %v1953 = vpack.c.b16 %v1904, %v1903
        %v1954 = vpack.c.b16 %v1906, %v1905
        %v1955 = vpack.c.b16 %v1908, %v1907
        %v1956 = vpack.c.b16 %v1910, %v1909
        %v1957 = vpack.c.b16 %v1912, %v1911
        %v1958 = vpack.c.b16 %v1914, %v1913
        %v1959 = vpack.c.b16 %v1916, %v1915
        %v1960 = vpack.c.b16 %v1918, %v1917
        %v1961 = vpack.c.b16 %v1920, %v1919
        %v1962 = vpack.c.b16 %v1922, %v1921
        %v1963 = vpack.c.b16 %v1924, %v1923
        %v1964 = vpack.c.b16 %v1926, %v1925
        %v1965 = vpack.c.b16 %v1928, %v1927
        %v1966 = vpack.c.b16 %v1930, %v1929
        %v1967 = vpack.c.b16 %v1932, %v1931
        %v1968 = vpack.c.b16 %v1934, %v1933
        %v1969 = vpack.c.b16 %v1936, %v1935
        %v1970 = vpack.c.b16 %v1938, %v1937
        %2003 = vmatprep.subr.bf16.mxu0 0
        %2004 = vmatpush1.bf16.msra.mxu0 %v1939
        %2005 = vmatprep.subr.bf16.mxu0 0
        %2006 = vmatpush1.bf16.msra.mxu0 %v1940
        %2007 = vmatprep.subr.bf16.mxu0 0
        %2008 = vmatpush1.bf16.msra.mxu0 %v1941
        %2009 = vmatprep.subr.bf16.mxu0 0
        %2010 = vmatpush1.bf16.msra.mxu0 %v1942
        %2011 = vmatprep.subr.bf16.mxu0 0
        %2012 = vmatpush1.bf16.msra.mxu0 %v1943
        %2013 = vmatprep.subr.bf16.mxu0 0
        %2014 = vmatpush1.bf16.msra.mxu0 %v1944
        %2015 = vmatprep.subr.bf16.mxu0 0
        %2016 = vmatpush1.bf16.msra.mxu0 %v1945
        %2017 = vmatprep.subr.bf16.mxu0 0
        %2018 = vmatpush1.bf16.msra.mxu0 %v1946
        %2019 = vmatprep.subr.bf16.mxu0 0
        %2020 = vmatpush1.bf16.msra.mxu0 %v1947
        %2021 = vmatprep.subr.bf16.mxu0 0
        %2022 = vmatpush1.bf16.msra.mxu0 %v1948
        %2023 = vmatprep.subr.bf16.mxu0 0
        %2024 = vmatpush1.bf16.msra.mxu0 %v1949
        %2025 = vmatprep.subr.bf16.mxu0 0
        %2026 = vmatpush1.bf16.msra.mxu0 %v1950
        %2027 = vmatprep.subr.bf16.mxu0 0
        %2028 = vmatpush1.bf16.msra.mxu0 %v1951
        %2029 = vmatprep.subr.bf16.mxu0 0
        %2030 = vmatpush1.bf16.msra.mxu0 %v1952
        %2031 = vmatprep.subr.bf16.mxu0 0
        %2032 = vmatpush1.bf16.msra.mxu0 %v1953
        %2033 = vmatprep.subr.bf16.mxu0 0
        %2034 = vmatpush1.bf16.msra.mxu0 %v1954
        %2035 = vmatprep.mubr.bf16.mxu0 %v1716
        %2036 = vmatmul.mubr.bf16.gmra.mrb[0].mxu0 %v1715
        %v2037 = vpop.f32.mrb[0].mxu0
        %v2038 = vadd.f32 1e-09, %v2037
        %v2039 = vpop.f32.mrb[0].mxu0
        %v2040 = vpop.f32.mrb[0].mxu0
        %v2041 = vadd.f32 1e-09, %v2040
        %v2042 = vpop.f32.mrb[0].mxu0
        %2043 = vmatprep.mubr.bf16.mxu0 %v1720
        %2044 = vmatmul.mubr.bf16.gmra.mrb[0].mxu0 %v1719
        %v2045 = vpop.f32.mrb[0].mxu0
        %v2046 = vadd.f32 1e-09, %v2045
        %v2047 = vpop.f32.mrb[0].mxu0
        %v2048 = vpop.f32.mrb[0].mxu0
        %v2049 = vadd.f32 1e-09, %v2048
        %v2050 = vpop.f32.mrb[0].mxu0
        %2051 = vmatprep.mubr.bf16.mxu0 %v1724
        %2052 = vmatmul.mubr.bf16.gmra.mrb[0].mxu0 %v1723
        %v2053 = vpop.f32.mrb[0].mxu0
        %v2054 = vadd.f32 1e-09, %v2053
        %v2055 = vpop.f32.mrb[0].mxu0
        %v2056 = vpop.f32.mrb[0].mxu0
        %v2057 = vadd.f32 1e-09, %v2056
        %v2058 = vpop.f32.mrb[0].mxu0
        %2059 = vmatprep.mubr.bf16.mxu0 %v1728
        %2060 = vmatmul.mubr.bf16.gmra.mrb[0].mxu0 %v1727
        %v2061 = vpop.f32.mrb[0].mxu0
        %v2062 = vadd.f32 1e-09, %v2061
        %v2063 = vpop.f32.mrb[0].mxu0
        %v2064 = vpop.f32.mrb[0].mxu0
        %v2065 = vadd.f32 1e-09, %v2064
        %v2066 = vpop.f32.mrb[0].mxu0
        %2067 = vmatprep.mubr.bf16.mxu0 %v1732
        %2068 = vmatmul.mubr.bf16.gmra.mrb[0].mxu0 %v1731
        %v2069 = vpop.f32.mrb[0].mxu0
        %v2070 = vadd.f32 1e-09, %v2069
        %v2071 = vpop.f32.mrb[0].mxu0
        %v2072 = vpop.f32.mrb[0].mxu0
        %v2073 = vadd.f32 1e-09, %v2072
        %v2074 = vpop.f32.mrb[0].mxu0
        %2075 = vmatprep.mubr.bf16.mxu0 %v1736
        %2076 = vmatmul.mubr.bf16.gmra.mrb[0].mxu0 %v1735
        %v2077 = vpop.f32.mrb[0].mxu0
        %v2078 = vadd.f32 1e-09, %v2077
        %v2079 = vpop.f32.mrb[0].mxu0
        %v2080 = vpop.f32.mrb[0].mxu0
        %v2081 = vadd.f32 1e-09, %v2080
        %v2082 = vpop.f32.mrb[0].mxu0
        %2083 = vmatprep.mubr.bf16.mxu0 %v1740
        %2084 = vmatmul.mubr.bf16.gmra.mrb[0].mxu0 %v1739
        %v2085 = vpop.f32.mrb[0].mxu0
        %v2086 = vadd.f32 1e-09, %v2085
        %v2087 = vpop.f32.mrb[0].mxu0
        %v2088 = vpop.f32.mrb[0].mxu0
        %v2089 = vadd.f32 1e-09, %v2088
        %v2090 = vpop.f32.mrb[0].mxu0
        %2091 = vmatprep.mubr.bf16.mxu0 %v1744
        %2092 = vmatmul.mubr.bf16.gmra.mrb[0].mxu0 %v1743
        %v2093 = vpop.f32.mrb[0].mxu0
        %v2094 = vadd.f32 1e-09, %v2093
        %v2095 = vpop.f32.mrb[0].mxu0
        %v2096 = vpop.f32.mrb[0].mxu0
        %v2097 = vadd.f32 1e-09, %v2096
        %v2098 = vpop.f32.mrb[0].mxu0
        %2099 = vdwg.mxu0
        %2100 = vmatprep.subr.bf16.mxu0 0
        %2101 = vmatpush1.bf16.msra.mxu0 %v1955
        %2102 = vmatprep.subr.bf16.mxu0 0
        %2103 = vmatpush1.bf16.msra.mxu0 %v1956
        %2104 = vmatprep.subr.bf16.mxu0 0
        %2105 = vmatpush1.bf16.msra.mxu0 %v1957
        %2106 = vmatprep.subr.bf16.mxu0 0
        %2107 = vmatpush1.bf16.msra.mxu0 %v1958
        %2108 = vmatprep.subr.bf16.mxu0 0
        %2109 = vmatpush1.bf16.msra.mxu0 %v1959
        %2110 = vmatprep.subr.bf16.mxu0 0
        %2111 = vmatpush1.bf16.msra.mxu0 %v1960
        %2112 = vmatprep.subr.bf16.mxu0 0
        %2113 = vmatpush1.bf16.msra.mxu0 %v1961
        %2114 = vmatprep.subr.bf16.mxu0 0
        %2115 = vmatpush1.bf16.msra.mxu0 %v1962
        %2116 = vmatprep.subr.bf16.mxu0 0
        %2117 = vmatpush1.bf16.msra.mxu0 %v1963
        %2118 = vmatprep.subr.bf16.mxu0 0
        %2119 = vmatpush1.bf16.msra.mxu0 %v1964
        %2120 = vmatprep.subr.bf16.mxu0 0
        %2121 = vmatpush1.bf16.msra.mxu0 %v1965
        %2122 = vmatprep.subr.bf16.mxu0 0
        %2123 = vmatpush1.bf16.msra.mxu0 %v1966
        %2124 = vmatprep.subr.bf16.mxu0 0
        %2125 = vmatpush1.bf16.msra.mxu0 %v1967
        %2126 = vmatprep.subr.bf16.mxu0 0
        %2127 = vmatpush1.bf16.msra.mxu0 %v1968
        %2128 = vmatprep.subr.bf16.mxu0 0
        %2129 = vmatpush1.bf16.msra.mxu0 %v1969
        %2130 = vmatprep.subr.bf16.mxu0 0
        %2131 = vmatpush1.bf16.msra.mxu0 %v1970
        %2132 = vmatprep.mubr.bf16.mxu0 %v1718
        %2133 = vmatmul.mubr.bf16.gmra.mrb[0].mxu0 %v1717
        %v2134 = vpop.f32.mrb[0].mxu0
        %v2135 = vadd.f32 %v2038, %v2134
        %v2136 = vpop.f32.mrb[0].mxu0
        %v2137 = vpop.f32.mrb[0].mxu0
        %v2138 = vadd.f32 %v2041, %v2137
        %v2139 = vpop.f32.mrb[0].mxu0
        %2140 = vmatprep.mubr.bf16.mxu0 %v1722
        %2141 = vmatmul.mubr.bf16.gmra.mrb[0].mxu0 %v1721
        %v2142 = vpop.f32.mrb[0].mxu0
        %v2143 = vadd.f32 %v2046, %v2142
        %v2144 = vpop.f32.mrb[0].mxu0
        %v2145 = vpop.f32.mrb[0].mxu0
        %v2146 = vadd.f32 %v2049, %v2145
        %v2147 = vpop.f32.mrb[0].mxu0
        %2148 = vmatprep.mubr.bf16.mxu0 %v1726
        %2149 = vmatmul.mubr.bf16.gmra.mrb[0].mxu0 %v1725
        %v2150 = vpop.f32.mrb[0].mxu0
        %v2151 = vadd.f32 %v2054, %v2150
        %v2152 = vpop.f32.mrb[0].mxu0
        %v2153 = vpop.f32.mrb[0].mxu0
        %v2154 = vadd.f32 %v2057, %v2153
        %v2155 = vpop.f32.mrb[0].mxu0
        %2156 = vmatprep.mubr.bf16.mxu0 %v1730
        %2157 = vmatmul.mubr.bf16.gmra.mrb[0].mxu0 %v1729
        %v2158 = vpop.f32.mrb[0].mxu0
        %v2159 = vadd.f32 %v2062, %v2158
        %v2160 = vpop.f32.mrb[0].mxu0
        %v2161 = vpop.f32.mrb[0].mxu0
        %v2162 = vadd.f32 %v2065, %v2161
        %v2163 = vpop.f32.mrb[0].mxu0
        %2164 = vmatprep.mubr.bf16.mxu0 %v1734
        %2165 = vmatmul.mubr.bf16.gmra.mrb[0].mxu0 %v1733
        %v2166 = vpop.f32.mrb[0].mxu0
        %v2167 = vadd.f32 %v2070, %v2166
        %v2168 = vpop.f32.mrb[0].mxu0
        %v2169 = vpop.f32.mrb[0].mxu0
        %v2170 = vadd.f32 %v2073, %v2169
        %v2171 = vpop.f32.mrb[0].mxu0
        %2172 = vmatprep.mubr.bf16.mxu0 %v1738
        %2173 = vmatmul.mubr.bf16.gmra.mrb[0].mxu0 %v1737
        %v2174 = vpop.f32.mrb[0].mxu0
        %v2175 = vadd.f32 %v2078, %v2174
        %v2176 = vpop.f32.mrb[0].mxu0
        %v2177 = vpop.f32.mrb[0].mxu0
        %v2178 = vadd.f32 %v2081, %v2177
        %v2179 = vpop.f32.mrb[0].mxu0
        %2180 = vmatprep.mubr.bf16.mxu0 %v1742
        %2181 = vmatmul.mubr.bf16.gmra.mrb[0].mxu0 %v1741
        %v2182 = vpop.f32.mrb[0].mxu0
        %v2183 = vadd.f32 %v2086, %v2182
        %v2184 = vpop.f32.mrb[0].mxu0
        %v2185 = vpop.f32.mrb[0].mxu0
        %v2186 = vadd.f32 %v2089, %v2185
        %v2187 = vpop.f32.mrb[0].mxu0
        %2188 = vmatprep.mubr.bf16.mxu0 %v1746
        %2189 = vmatmul.mubr.bf16.gmra.mrb[0].mxu0 %v1745
        %v2190 = vpop.f32.mrb[0].mxu0
        %v2191 = vadd.f32 %v2094, %v2190
        %v2192 = vpop.f32.mrb[0].mxu0
        %v2193 = vpop.f32.mrb[0].mxu0
        %v2194 = vadd.f32 %v2097, %v2193
        %v2195 = vpop.f32.mrb[0].mxu0
        %2196 = vdwg.mxu0
        %v2197 = vlog2.pop %v2135
        %v2198 = vmul.f32 %v2197, 0.6931472
        %v2199 = vlog2.pop %v2138
        %v2200 = vmul.f32 %v2199, 0.6931472
        %v2201 = vlog2.pop %v2143
        %v2202 = vmul.f32 %v2201, 0.6931472
        %v2203 = vlog2.pop %v2146
        %v2204 = vmul.f32 %v2203, 0.6931472
        %v2205 = vlog2.pop %v2151
        %v2206 = vmul.f32 %v2205, 0.6931472
        %v2207 = vlog2.pop %v2154
        %v2208 = vmul.f32 %v2207, 0.6931472
        %v2209 = vlog2.pop %v2159
        %v2210 = vmul.f32 %v2209, 0.6931472
        %v2211 = vlog2.pop %v2162
        %v2212 = vmul.f32 %v2211, 0.6931472
        %v2213 = vlog2.pop %v2167
        %v2214 = vmul.f32 %v2213, 0.6931472
        %v2215 = vlog2.pop %v2170
        %v2216 = vmul.f32 %v2215, 0.6931472
        %v2217 = vlog2.pop %v2175
        %v2218 = vmul.f32 %v2217, 0.6931472
        %v2219 = vlog2.pop %v2178
        %v2220 = vmul.f32 %v2219, 0.6931472
        %v2221 = vlog2.pop %v2183
        %v2222 = vmul.f32 %v2221, 0.6931472
        %v2223 = vlog2.pop %v2186
        %v2224 = vmul.f32 %v2223, 0.6931472
        %v2225 = vlog2.pop %v2191
        %v2226 = vmul.f32 %v2225, 0.6931472
        %v2227 = vlog2.pop %v2194
        %v2228 = vmul.f32 %v2227, 0.6931472
        %2229 = vxpose.xlu0.b32.start [1/16] %v2198, 128
        %2230 = vxpose.xlu0.b32.cont [2/16] %v2200, 128
        %2231 = vxpose.xlu0.b32.cont [3/16] %v2202, 128
        %2232 = vxpose.xlu0.b32.cont [4/16] %v2204, 128
        %2233 = vxpose.xlu0.b32.cont [5/16] %v2206, 128
        %2234 = vxpose.xlu0.b32.cont [6/16] %v2208, 128
        %2235 = vxpose.xlu0.b32.cont [7/16] %v2210, 128
        %2236 = vxpose.xlu0.b32.cont [8/16] %v2212, 128
        %2237 = vxpose.xlu0.b32.cont [9/16] %v2214, 128
        %2238 = vxpose.xlu0.b32.cont [10/16] %v2216, 128
        %2239 = vxpose.xlu0.b32.cont [11/16] %v2218, 128
        %2240 = vxpose.xlu0.b32.cont [12/16] %v2220, 128
        %2241 = vxpose.xlu0.b32.cont [13/16] %v2222, 128
        %2242 = vxpose.xlu0.b32.cont [14/16] %v2224, 128
        %2243 = vxpose.xlu0.b32.cont [15/16] %v2226, 128
        %2244 = vxpose.xlu0.b32.end [16/16] %v2228, 128
        %v2245 = vpop.trf.xlu0
        %v2246 = vpop.trf.xlu0
        %v2247 = vpop.trf.xlu0
        %v2248 = vpop.trf.xlu0
        %v2249 = vpop.trf.xlu0
        %v2250 = vpop.trf.xlu0
        %v2251 = vpop.trf.xlu0
        %v2252 = vpop.trf.xlu0
        %v2253 = vpop.trf.xlu0
        %v2254 = vpop.trf.xlu0
        %v2255 = vpop.trf.xlu0
        %v2256 = vpop.trf.xlu0
        %v2257 = vpop.trf.xlu0
        %v2258 = vpop.trf.xlu0
        %v2259 = vpop.trf.xlu0
        %v2260 = vpop.trf.xlu0
        %2261 = vst [vmem:[%s236] sm:$0xff] %v2245
        %2262 = vst [vmem:[%s236 + $0x8] sm:$0xff] %v2246
        %2263 = vst [vmem:[%s236 + $0x10] sm:$0xff] %v2247
        %2264 = vst [vmem:[%s236 + $0x18] sm:$0xff] %v2248
        %2265 = vst [vmem:[%s236 + $0x20] sm:$0xff] %v2249
        %2266 = vst [vmem:[%s236 + $0x28] sm:$0xff] %v2250
        %2267 = vst [vmem:[%s236 + $0x30] sm:$0xff] %v2251
        %2268 = vst [vmem:[%s236 + $0x38] sm:$0xff] %v2252
        %2269 = vst [vmem:[%s236 + $0x40] sm:$0xff] %v2253
        %2270 = vst [vmem:[%s236 + $0x48] sm:$0xff] %v2254
        %2271 = vst [vmem:[%s236 + $0x50] sm:$0xff] %v2255
        %2272 = vst [vmem:[%s236 + $0x58] sm:$0xff] %v2256
        %2273 = vst [vmem:[%s236 + $0x60] sm:$0xff] %v2257
        %2274 = vst [vmem:[%s236 + $0x68] sm:$0xff] %v2258
        %2275 = vst [vmem:[%s236 + $0x70] sm:$0xff] %v2259
        %2276 = vst [vmem:[%s236 + $0x78] sm:$0xff] %v2260
        %s2277 = sand.u32 %s113, 1
        %s2278 = scalar_lea.sflag [#allocation4], %s2277
        %s2279 = sand.u32 %s113, 1
        %s2280 = smul.addr %s2279, 128
        %s2281 = scalar_lea.vmem [#allocation8], %s2280
        // Predicated region
        $region45: #{tpu_custom_call.1} parent=31 // pred_check
          %p2282 = pneg %p123
        $region46: #{tpu_custom_call.1} parent=31 // pred_check_branch
          %2284 = sbr.rel (%p2282) target = $region48
        $region47: #{tpu_custom_call.1} parent=31 // pred_region
          %s2286 = ssub.s32 2048, 2048
          %2287 = vsyncadd %s2278, %s2286
          %s2288 = smul.addr %s25, 16
          %s2289 = sadd.s32 %s26, %s2288
          %s2290 = smul.addr %s2289, 128
          %s2291 = scalar_lea.hbm %s3, %s2290
          %s2292 = sshll.u32 %s2281, 4
          %s2293 = int_to_ptr.vmem [resolvable:$true] %s2292
          %2298 = dma.vmem_to_hbm [thread:$0]  %s2293, 2048, %s2291, %s2278, 128, 128, 8
        $region48: #{tpu_custom_call.1} parent=31 // pred_fallthru
          _
      $region32: #{tpu_custom_call.1} parent=5 // pred_fallthru
        _
      %p2299 = scmp.le.s32.totalorder 2, %s16
      // Predicated region
      $region49: #{tpu_custom_call.1} parent=5 // pred_check
        %p2300 = pneg %p2299
      $region50: #{tpu_custom_call.1} parent=5 // pred_check_branch
        %2302 = sbr.rel (%p2300) target = $region52
      $region51: #{tpu_custom_call.1} parent=5 // pred_region
        %s2303 = ssub.s32 %s16, 2
        // Predicated region
        $region53: #{tpu_custom_call.1} parent=51 // pred_check
          %p2304 = pneg %p129
        $region54: #{tpu_custom_call.1} parent=51 // pred_check_branch
          %2306 = sbr.rel (%p2304) target = $region56
        $region55: #{tpu_custom_call.1} parent=51 // pred_region
          %s2307 = sand.u32 %s114, 1
          %s2308 = scalar_lea.sflag [#allocation4], %s2307
          %s2309 = sand.u32 %s114, 1
          %s2310 = smul.addr %s2309, 128
          %s2311 = scalar_lea.vmem [#allocation8], %s2310
          %2312 = dma.done %s2308, 2048
        $region56: #{tpu_custom_call.1} parent=51 // pred_fallthru
          _
      $region52: #{tpu_custom_call.1} parent=5 // pred_fallthru
        _
    $region6: #{tpu_custom_call.1} parent=1 // loop_footer
      %s20 = sadd.s32 1, %s16
    $region7: #{tpu_custom_call.1} parent=1 // loop_footer_branch
      %15 = sbr.rel target = $region3
    $region8: #{tpu_custom_call.1} parent=1 // loop_exit
      _
    %2313 = vsyncpa [#allocation3], 1
    %s2314 = scalar_lea.sflag [#allocation3], 1
    %2315 = vsyncpa %s2314, 1
    %2316 = vsyncpa [#allocation6], 1
    %2317 = vsyncpa [#allocation4], 1
    %s2318 = scalar_lea.sflag [#allocation4], 1
    %2319 = vsyncpa %s2318, 1

</llo_original>
